<compile_context>
chip_gen: v6e
topology: v6e:2x2x1
jax: 0.10.0
libtpu: 0.0.40
codegen_flags: <defaults>
</compile_context>

<pallas_src>
import jax
import jax.numpy as jnp
from jax.experimental import pallas as pl
from jax.experimental.pallas import tpu as pltpu

LN_EPS = 1e-5      # torch LayerNorm default eps
ROW_ALIGN = 16     # row-tile alignment (native bf16 sublane tile; fine for f32)
LANE = 128


def _round_up(n, m):
    return ((n + m - 1) // m) * m


def _cdiv(a, b):
    return -(-a // b)


# ----------------------------- fused kernel ---------------------------------

def _make_kernel(c_valid, hp, hc, gate_dtype):
    """Fused LN -> GLU -> projection kernel for padded sizes (Cp, Hp, Hc)."""
    n_chunks = hp // hc

    def kernel(x_ref, lnw_ref, lnb_ref, w1_ref, w2_ref, o_ref):
        # x_ref : [TR, Cp]    lnw/lnb : [1, Cp] (f32)
        # w1_ref: [Cp, 2*Hp]  w2_ref  : [Hp, Cp]   (compute dtype, e.g. bf16)
        x = x_ref[...].astype(jnp.float32)
        cp = x.shape[-1]

        # ---- LayerNorm over the real C channels only (f32, VPU) ----
        inv_c = 1.0 / c_valid
        mu = jnp.sum(x, axis=-1, keepdims=True) * inv_c          # padded lanes are 0
        xc = x - mu
        if c_valid != cp:                                        # mask padded lanes
            lane = jax.lax.broadcasted_iota(jnp.int32, x.shape, 1)
            xc = jnp.where(lane < c_valid, xc, 0.0)
        var = jnp.sum(xc * xc, axis=-1, keepdims=True) * inv_c
        xn = xc * jax.lax.rsqrt(var + LN_EPS) * lnw_ref[...] + lnb_ref[...]
        xn = xn.astype(w1_ref.dtype)

        # ---- GLU + output projection, hidden dim in lane-aligned chunks ----
        acc = None
        for k in range(n_chunks):                                # static unroll
            lo = k * hc
            a = jnp.dot(xn, w1_ref[:, lo:lo + hc],
                        preferred_element_type=jnp.float32)
            b = jnp.dot(xn, w1_ref[:, hp + lo:hp + lo + hc],
                        preferred_element_type=jnp.float32)
            if gate_dtype != jnp.float32:                        # v6e/v7x EUP relief
                a = a.astype(gate_dtype)
                b = b.astype(gate_dtype)
            g = (a * jax.nn.sigmoid(a)) * b                      # swish(a) * b
            part = jnp.dot(g.astype(w2_ref.dtype), w2_ref[lo:lo + hc, :],
                           preferred_element_type=jnp.float32)
            acc = part if acc is None else acc + part
        o_ref[...] = acc.astype(o_ref.dtype)

    return kernel


# ----------------------------- wrapper ---------------------------------------

def prepare_params(params, *, compute_dtype=jnp.bfloat16, hidden_chunk=512):
    """Cast + pad weights ONCE (outside the per-layer call path).

    Pads C up to a multiple of 128 (lane-dense) and H up to n_chunks * Hc with
    Hc a multiple of 128, so every MXU operand / ref slice is lane-aligned.
    Zero padding + masked LN statistics keep the math exactly equivalent.
    """
    c = params["w1"].shape[0]
    h = params["w2"].shape[0]
    assert params["w1"].shape == (c, 2 * h)
    assert params["w2"].shape == (h, c)

    cp = _round_up(c, LANE)
    hp0 = _round_up(h, LANE)
    n_chunks = max(1, _cdiv(hp0, hidden_chunk))
    hc = _round_up(_cdiv(hp0, n_chunks), LANE)
    hp = n_chunks * hc

    w1 = params["w1"].astype(compute_dtype)
    w1a = jnp.zeros((cp, hp), compute_dtype).at[:c, :h].set(w1[:, :h])
    w1b = jnp.zeros((cp, hp), compute_dtype).at[:c, :h].set(w1[:, h:])
    w2p = jnp.zeros((hp, cp), compute_dtype).at[:h, :c].set(
        params["w2"].astype(compute_dtype))
    lnw = jnp.zeros((1, cp), jnp.float32).at[0, :c].set(
        params["ln_w"].astype(jnp.float32))
    lnb = jnp.zeros((1, cp), jnp.float32).at[0, :c].set(
        params["ln_b"].astype(jnp.float32))
    return {
        "w1": jnp.concatenate([w1a, w1b], axis=1),   # [Cp, 2*Hp]
        "w2": w2p,                                   # [Hp, Cp]
        "ln_w": lnw, "ln_b": lnb,
        "c": c, "cp": cp, "h": h, "hp": hp, "hc": hc,
    }


def _choose_tile_rows(r, block_rows, min_steps):
    """Row tile: multiple of 16, minimal padding, >= min_steps grid steps."""
    max_tr = _round_up(max(1, min(block_rows, r)), ROW_ALIGN)
    steps = _cdiv(r, max_tr)
    if r >= min_steps * ROW_ALIGN:
        steps = max(steps, min_steps)
    return _round_up(_cdiv(r, steps), ROW_ALIGN)


def transition(x, prep, *, block_rows=512, gate_dtype=jnp.float32,
               min_row_steps=2, stream_buffers=2):
    """Fused Transition forward.  x: [..., C] -> [..., C] (same dtype as x).

    Per-generation tuning notes:
      v6e / v5e (128 MiB VMEM): block_rows 512-1024 is fine for large R; v5e
        should keep gate_dtype=f32 (no bf16 VPU/EUP) and can use stream_buffers=3
        if the activation DMA is exposed for tiny C.
      v7x (64 MiB VMEM): keep block_rows <= 256-512 for large C/H; bf16 gate ok.
    Pass bf16 `x` to stream activations/output in bf16 (LN stays f32 inside).
    """
    orig_shape = x.shape
    c, cp, hp, hc = prep["c"], prep["cp"], prep["hp"], prep["hc"]
    assert orig_shape[-1] == c
    r = x.size // c
    x2 = x.reshape(r, c)

    tr = _choose_tile_rows(r, block_rows, min_row_steps)
    rp = _round_up(r, tr)
    if rp != r or cp != c:
        x2 = jnp.pad(x2, ((0, rp - r), (0, cp - c)))

    kernel = _make_kernel(c_valid=c, hp=hp, hc=hc, gate_dtype=gate_dtype)

    # VMEM budget: single-buffered weights + multi-buffered activation/output
    # tiles + f32 intermediates; cap at 48 MiB so one config also fits v7x.
    itemsize = x2.dtype.itemsize
    bytes_w = ((prep["w1"].size + prep["w2"].size) * prep["w1"].dtype.itemsize
               + 2 * cp * 4)
    bytes_io = (stream_buffers + 2) * tr * cp * itemsize
    bytes_mid = tr * (3 * hc + 2 * cp) * 4
    footprint = bytes_w + bytes_io + bytes_mid
    vmem_limit = int(max(min(2 * footprint, 48 << 20),
                         footprint + (4 << 20), 8 << 20))

    stream_kwargs = ({} if stream_buffers == 2
                     else {"pipeline_mode": pl.Buffered(stream_buffers)})
    resident = {"pipeline_mode": pl.Buffered(1)}   # constant index_map -> 1 buffer

    out = pl.pallas_call(
        kernel,
        out_shape=jax.ShapeDtypeStruct((rp, cp), x.dtype),
        grid=(rp // tr,),
        in_specs=[
            pl.BlockSpec((tr, cp), lambda i: (i, 0), **stream_kwargs),  # x stream
            pl.BlockSpec((1, cp), lambda i: (0, 0), **resident),        # LN scale
            pl.BlockSpec((1, cp), lambda i: (0, 0), **resident),        # LN bias
            pl.BlockSpec((cp, 2 * hp), lambda i: (0, 0), **resident),   # W1 (GLU)
            pl.BlockSpec((hp, cp), lambda i: (0, 0), **resident),       # W2
        ],
        out_specs=pl.BlockSpec((tr, cp), lambda i: (i, 0), **stream_kwargs),
        compiler_params=pltpu.CompilerParams(
            dimension_semantics=("parallel",),
            vmem_limit_bytes=vmem_limit,
        ),
    )(x2, prep["ln_w"], prep["ln_b"], prep["w1"], prep["w2"])

    if rp != r or cp != c:
        out = out[:r, :c]
    return out.reshape(orig_shape)


# --------------- deterministic params + pure-JAX reference -------------------

def init_params(key, c_x, factor=4):
    ks = jax.random.split(key, 4)
    h = factor * c_x
    b1 = 1.0 / jnp.sqrt(c_x)
    b2 = 1.0 / jnp.sqrt(h)
    return {
        "ln_w": jnp.ones((c_x,), jnp.float32)
                + 0.02 * jax.random.normal(ks[0], (c_x,), jnp.float32),
        "ln_b": 0.02 * jax.random.normal(ks[1], (c_x,), jnp.float32),
        # transition1.weight.T : Linear(c_x, 2H, bias=False)
        "w1": jax.random.uniform(ks[2], (c_x, 2 * h), jnp.float32,
                                 minval=-b1, maxval=b1),
        # transition2.weight.T : Linear(H, c_x, bias=False)
        "w2": jax.random.uniform(ks[3], (h, c_x), jnp.float32,
                                 minval=-b2, maxval=b2),
    }


def reference(x, p):
    mu = jnp.mean(x, -1, keepdims=True)
    var = jnp.mean((x - mu) ** 2, -1, keepdims=True)
    ln = (x - mu) / jnp.sqrt(var + LN_EPS) * p["ln_w"] + p["ln_b"]
    y = jnp.einsum("...c,ch->...h", ln, p["w1"], precision="highest")
    h = p["w2"].shape[0]
    a, b = y[..., :h], y[..., h:]
    g = jax.nn.silu(a) * b
    return jnp.einsum("...h,hc->...c", g, p["w2"], precision="highest")


if __name__ == "__main__":
    key = jax.random.PRNGKey(0)
    kx, kp = jax.random.split(key)
    B, N, C, factor = 2, 96, 64, 4       # R = 192 rows, H = 256, C padded to 128

    params = init_params(kp, C, factor)
    # hidden_chunk=128 -> exercises the chunked hidden-dim path (2 chunks).
    prep = prepare_params(params, compute_dtype=jnp.bfloat16, hidden_chunk=128)
    x = jax.random.normal(kx, (B, N, C), jnp.float32)
    ref = reference(x, params)
    ref_scale = float(jnp.max(jnp.abs(ref))) + 1e-6

    # f32-streamed run (safe on every TPU generation).
    out = jax.block_until_ready(transition(x, prep, block_rows=128))
    assert out.shape == (B, N, C), out.shape
    assert bool(jnp.all(jnp.isfinite(out)))
    rel = float(jnp.max(jnp.abs(out - ref))) / ref_scale
    assert rel < 5e-2, f"f32-stream mismatch: rel_err={rel}"

    # bf16-streamed run (recommended production path; LN/accum still f32).
    out_bf = jax.block_until_ready(
        transition(x.astype(jnp.bfloat16), prep, block_rows=128))
    assert out_bf.dtype == jnp.bfloat16
    assert bool(jnp.all(jnp.isfinite(out_bf)))
    rel_bf = float(jnp.max(jnp.abs(out_bf.astype(jnp.float32) - ref))) / ref_scale
    assert rel_bf < 1e-1, f"bf16-stream mismatch: rel_err={rel_bf}"

    print("KERNEL_OK")
</pallas_src>

<mosaic_0001>
module attributes {stable_mosaic.version = 11 : i64} {
  func.func @kernel(%arg0: i32, %arg1: memref<96x128xf32, #tpu.memory_space<vmem>>, %arg2: memref<1x128xf32, #tpu.memory_space<vmem>>, %arg3: memref<1x128xf32, #tpu.memory_space<vmem>>, %arg4: memref<128x512xbf16, #tpu.memory_space<vmem>>, %arg5: memref<256x128xbf16, #tpu.memory_space<vmem>>, %arg6: memref<96x128xf32, #tpu.memory_space<vmem>>) attributes {dimension_semantics = [#tpu.dimension_semantics<parallel>], iteration_bounds = array<i64: 2>, scalar_prefetch = 0 : i64, scratch_operands = 0 : i64, tpu.core_type = #tpu.core_type<tc>, window_params = [{transform_indices = @transform_0, window_bounds = array<i64: 96, 128>}, {pipeline_mode = #tpu.pipeline_mode<synchronous>, transform_indices = @transform_1, window_bounds = array<i64: 1, 128>}, {pipeline_mode = #tpu.pipeline_mode<synchronous>, transform_indices = @transform_2, window_bounds = array<i64: 1, 128>}, {pipeline_mode = #tpu.pipeline_mode<synchronous>, transform_indices = @transform_3, window_bounds = array<i64: 128, 512>}, {pipeline_mode = #tpu.pipeline_mode<synchronous>, transform_indices = @transform_4, window_bounds = array<i64: 256, 128>}, {transform_indices = @transform_5, window_bounds = array<i64: 96, 128>}]} {
    %c0 = arith.constant 0 : index
    %c0_0 = arith.constant 0 : index
    %0 = vector.load %arg1[%c0, %c0_0] : memref<96x128xf32, #tpu.memory_space<vmem>>, vector<96x128xf32>
    %cst = arith.constant dense<0.000000e+00> : vector<96xf32>
    %1 = vector.multi_reduction <add>, %0, %cst [1] : vector<96x128xf32> to vector<96xf32>
    %2 = vector.shape_cast %1 : vector<96xf32> to vector<96x1xf32>
    %cst_1 = arith.constant 1.562500e-02 : f32
    %3 = vector.broadcast %cst_1 : f32 to vector<96x1xf32>
    %4 = arith.mulf %2, %3 : vector<96x1xf32>
    %5 = vector.broadcast %4 : vector<96x1xf32> to vector<96x128xf32>
    %6 = arith.subf %0, %5 : vector<96x128xf32>
    %7 = tpu.iota {dimensions = array<i32: 1>} : vector<96x128xi32>
    %c64_i32 = arith.constant 64 : i32
    %8 = vector.broadcast %c64_i32 : i32 to vector<96x128xi32>
    %9 = arith.cmpi slt, %7, %8 : vector<96x128xi32>
    %cst_2 = arith.constant 0.000000e+00 : f32
    %10 = vector.broadcast %cst_2 : f32 to vector<96x128xf32>
    %11 = arith.select %9, %6, %10 : vector<96x128xi1>, vector<96x128xf32>
    %12 = arith.mulf %11, %11 : vector<96x128xf32>
    %cst_3 = arith.constant dense<0.000000e+00> : vector<96xf32>
    %13 = vector.multi_reduction <add>, %12, %cst_3 [1] : vector<96x128xf32> to vector<96xf32>
    %14 = vector.shape_cast %13 : vector<96xf32> to vector<96x1xf32>
    %cst_4 = arith.constant 1.562500e-02 : f32
    %15 = vector.broadcast %cst_4 : f32 to vector<96x1xf32>
    %16 = arith.mulf %14, %15 : vector<96x1xf32>
    %cst_5 = arith.constant 9.99999974E-6 : f32
    %17 = vector.broadcast %cst_5 : f32 to vector<96x1xf32>
    %18 = arith.addf %16, %17 : vector<96x1xf32>
    %19 = math.rsqrt %18 : vector<96x1xf32>
    %20 = vector.broadcast %19 : vector<96x1xf32> to vector<96x128xf32>
    %21 = arith.mulf %11, %20 : vector<96x128xf32>
    %c0_6 = arith.constant 0 : index
    %c0_7 = arith.constant 0 : index
    %22 = vector.load %arg2[%c0_6, %c0_7] : memref<1x128xf32, #tpu.memory_space<vmem>>, vector<1x128xf32>
    %23 = vector.broadcast %22 : vector<1x128xf32> to vector<96x128xf32>
    %24 = arith.mulf %21, %23 : vector<96x128xf32>
    %c0_8 = arith.constant 0 : index
    %c0_9 = arith.constant 0 : index
    %25 = vector.load %arg3[%c0_8, %c0_9] : memref<1x128xf32, #tpu.memory_space<vmem>>, vector<1x128xf32>
    %26 = vector.broadcast %25 : vector<1x128xf32> to vector<96x128xf32>
    %27 = arith.addf %24, %26 : vector<96x128xf32>
    %28 = arith.truncf %27 : vector<96x128xf32> to vector<96x128xbf16>
    %c0_10 = arith.constant 0 : index
    %c0_11 = arith.constant 0 : index
    %29 = vector.load %arg4[%c0_10, %c0_11] : memref<128x512xbf16, #tpu.memory_space<vmem>>, vector<128x128xbf16>
    %cst_12 = arith.constant dense<0.000000e+00> : vector<96x128xf32>
    %30 = tpu.matmul %28, %29, %cst_12 {dimension_numbers = #tpu.dot_dimension_numbers<[1], [0], [0], [1], [0, 0, 1, 1], [], []>} : vector<96x128xbf16>, vector<128x128xbf16>, vector<96x128xf32> -> vector<96x128xf32>
    %c0_13 = arith.constant 0 : index
    %c256 = arith.constant 256 : index
    %31 = vector.load %arg4[%c0_13, %c256] : memref<128x512xbf16, #tpu.memory_space<vmem>>, vector<128x128xbf16>
    %cst_14 = arith.constant dense<0.000000e+00> : vector<96x128xf32>
    %32 = tpu.matmul %28, %31, %cst_14 {dimension_numbers = #tpu.dot_dimension_numbers<[1], [0], [0], [1], [0, 0, 1, 1], [], []>} : vector<96x128xbf16>, vector<128x128xbf16>, vector<96x128xf32> -> vector<96x128xf32>
    %33 = arith.negf %30 : vector<96x128xf32>
    %34 = math.exp %33 : vector<96x128xf32>
    %cst_15 = arith.constant 1.000000e+00 : f32
    %35 = vector.broadcast %cst_15 : f32 to vector<96x128xf32>
    %36 = arith.addf %35, %34 : vector<96x128xf32>
    %37 = arith.divf %35, %36 : vector<96x128xf32>
    %38 = arith.mulf %30, %37 : vector<96x128xf32>
    %39 = arith.mulf %38, %32 : vector<96x128xf32>
    %40 = arith.truncf %39 : vector<96x128xf32> to vector<96x128xbf16>
    %c0_16 = arith.constant 0 : index
    %c0_17 = arith.constant 0 : index
    %41 = vector.load %arg5[%c0_16, %c0_17] : memref<256x128xbf16, #tpu.memory_space<vmem>>, vector<128x128xbf16>
    %cst_18 = arith.constant dense<0.000000e+00> : vector<96x128xf32>
    %42 = tpu.matmul %40, %41, %cst_18 {dimension_numbers = #tpu.dot_dimension_numbers<[1], [0], [0], [1], [0, 0, 1, 1], [], []>} : vector<96x128xbf16>, vector<128x128xbf16>, vector<96x128xf32> -> vector<96x128xf32>
    %c0_19 = arith.constant 0 : index
    %c128 = arith.constant 128 : index
    %43 = vector.load %arg4[%c0_19, %c128] : memref<128x512xbf16, #tpu.memory_space<vmem>>, vector<128x128xbf16>
    %cst_20 = arith.constant dense<0.000000e+00> : vector<96x128xf32>
    %44 = tpu.matmul %28, %43, %cst_20 {dimension_numbers = #tpu.dot_dimension_numbers<[1], [0], [0], [1], [0, 0, 1, 1], [], []>} : vector<96x128xbf16>, vector<128x128xbf16>, vector<96x128xf32> -> vector<96x128xf32>
    %c0_21 = arith.constant 0 : index
    %c384 = arith.constant 384 : index
    %45 = vector.load %arg4[%c0_21, %c384] : memref<128x512xbf16, #tpu.memory_space<vmem>>, vector<128x128xbf16>
    %cst_22 = arith.constant dense<0.000000e+00> : vector<96x128xf32>
    %46 = tpu.matmul %28, %45, %cst_22 {dimension_numbers = #tpu.dot_dimension_numbers<[1], [0], [0], [1], [0, 0, 1, 1], [], []>} : vector<96x128xbf16>, vector<128x128xbf16>, vector<96x128xf32> -> vector<96x128xf32>
    %47 = arith.negf %44 : vector<96x128xf32>
    %48 = math.exp %47 : vector<96x128xf32>
    %cst_23 = arith.constant 1.000000e+00 : f32
    %49 = vector.broadcast %cst_23 : f32 to vector<96x128xf32>
    %50 = arith.addf %49, %48 : vector<96x128xf32>
    %51 = arith.divf %49, %50 : vector<96x128xf32>
    %52 = arith.mulf %44, %51 : vector<96x128xf32>
    %53 = arith.mulf %52, %46 : vector<96x128xf32>
    %54 = arith.truncf %53 : vector<96x128xf32> to vector<96x128xbf16>
    %c128_24 = arith.constant 128 : index
    %c0_25 = arith.constant 0 : index
    %55 = vector.load %arg5[%c128_24, %c0_25] : memref<256x128xbf16, #tpu.memory_space<vmem>>, vector<128x128xbf16>
    %cst_26 = arith.constant dense<0.000000e+00> : vector<96x128xf32>
    %56 = tpu.matmul %54, %55, %cst_26 {dimension_numbers = #tpu.dot_dimension_numbers<[1], [0], [0], [1], [0, 0, 1, 1], [], []>} : vector<96x128xbf16>, vector<128x128xbf16>, vector<96x128xf32> -> vector<96x128xf32>
    %57 = arith.addf %42, %56 : vector<96x128xf32>
    %c0_27 = arith.constant 0 : index
    %c0_28 = arith.constant 0 : index
    %58 = vector.load %arg6[%c0_27, %c0_28] : memref<96x128xf32, #tpu.memory_space<vmem>>, vector<96x128xf32>
    tpu.vector_store %arg6[%c0_27, %c0_28], %57 {strides = array<i32>} : memref<96x128xf32, #tpu.memory_space<vmem>>, vector<96x128xf32>,
    return
  }
  func.func @transform_0(%arg0: i32) -> (i32, i32) {
    %c0_i32 = arith.constant 0 : i32
    %c0_i32_0 = arith.constant 0 : i32
    return %arg0, %c0_i32 : i32, i32
  }
  func.func @transform_1(%arg0: i32) -> (i32, i32) {
    %c0_i32 = arith.constant 0 : i32
    %c0_i32_0 = arith.constant 0 : i32
    %c0_i32_1 = arith.constant 0 : i32
    return %c0_i32, %c0_i32_0 : i32, i32
  }
  func.func @transform_2(%arg0: i32) -> (i32, i32) {
    %c0_i32 = arith.constant 0 : i32
    %c0_i32_0 = arith.constant 0 : i32
    %c0_i32_1 = arith.constant 0 : i32
    return %c0_i32, %c0_i32_0 : i32, i32
  }
  func.func @transform_3(%arg0: i32) -> (i32, i32) {
    %c0_i32 = arith.constant 0 : i32
    %c0_i32_0 = arith.constant 0 : i32
    %c0_i32_1 = arith.constant 0 : i32
    return %c0_i32, %c0_i32_0 : i32, i32
  }
  func.func @transform_4(%arg0: i32) -> (i32, i32) {
    %c0_i32 = arith.constant 0 : i32
    %c0_i32_0 = arith.constant 0 : i32
    %c0_i32_1 = arith.constant 0 : i32
    return %c0_i32, %c0_i32_0 : i32, i32
  }
  func.func @transform_5(%arg0: i32) -> (i32, i32) {
    %c0_i32 = arith.constant 0 : i32
    %c0_i32_0 = arith.constant 0 : i32
    return %arg0, %c0_i32 : i32, i32
  }
}

</mosaic_0001>

<llo_original>
// kernel: tpu_custom_call.1
$region0: #{tpu_custom_call.1}
  #allocation0 [shape = 'u32[]', space=smem, size = 0x4, offset = 0x4, fixed_abs, tag = 'smem constant byte address 0x4 - core index']
  #allocation1 [shape = 'u32[144,128]{1,0:T(1,128)}', space=vmem, size = 0x12000, scoped, tag = 'internal scratch']
  %s0 = inlined_call_operand.hbm [shape: f32[192,128], index: 0, kind: input, shape index: {}]
  %s1 = inlined_call_operand.vmem [shape: f32[1,128], index: 1, kind: input, shape index: {}]
  %s2 = inlined_call_operand.vmem [shape: f32[1,128], index: 2, kind: input, shape index: {}]
  %s3 = inlined_call_operand.hbm [shape: bf16[128,512], index: 3, kind: input, shape index: {}]
  %s4 = inlined_call_operand.hbm [shape: bf16[256,128], index: 4, kind: input, shape index: {}]
  %s5 = inlined_call_operand.hbm [shape: f32[192,128], index: 5, kind: output, shape index: {}]
  %s6 = sld [smem:[#allocation0]]
  $region65: #{tpu_custom_call.1} parent=0
    _
  %s8 = ssub.s32 1, %s6
  %s9 = scalar_select 0, %s8, %s6
  $region1: #{tpu_custom_call.1} parent=0
    #allocation2 [shape = 'u8[98304]{0}', space=vmem, size = 0x18000, scoped, tag = 'input window, operand 0']
    #allocation3 [shape = 's32[2]{0}', space=sflag, size = 0x8, scoped, tag = 'scoped memory for tpu_custom_call.1']
    #allocation4 [shape = 's32[2]{0}', space=sflag, size = 0x8, scoped, tag = 'scoped memory for tpu_custom_call.1']
    #allocation5 [shape = 'u8[131072]{0}', space=vmem, size = 0x20000, scoped, tag = 'input window, operand 3, single buffered']
    #allocation6 [shape = 's32[1]{0}', space=sflag, size = 0x4, scoped, tag = 'scoped memory for tpu_custom_call.1']
    #allocation7 [shape = 'u8[65536]{0}', space=vmem, size = 0x10000, scoped, tag = 'input window, operand 4, single buffered']
    #allocation8 [shape = 'u8[98304]{0}', space=vmem, size = 0x18000, scoped, tag = 'output window, operand 0']
    %10 = vsyncpa [#allocation3], 0
    %s11 = scalar_lea.sflag [#allocation3], 1
    %12 = vsyncpa %s11, 0
    %13 = vsyncpa [#allocation6], 0
    %14 = vsyncpa [#allocation4], 0
    %s15 = scalar_lea.sflag [#allocation4], 1
    %16 = vsyncpa %s15, 0
    loop: start=0, step=1, limit=4
    $region2: #{tpu_custom_call.1} parent=1 // loop_pre_header
      _
    $region3: #{tpu_custom_call.1} parent=1 // loop_header
      %s18 = sphi 0, %s22
      %p19 = scmp.ge.s32.totalorder %s18, 4
      %s28 = sphi 0, %s30
      %s31 = sphi 0, %s28
      %s32 = sphi 0, %s31
      %s48 = sphi 0, %s32
      %s52 = sphi 0, %s52
      %s54 = sphi 0, %s52
      %s55 = sphi 0, %s54
      %s69 = sphi 0, %s55
      %s73 = sphi 0, %s73
      %s75 = sphi 0, %s73
      %s76 = sphi 0, %s75
      %s90 = sphi 0, %s76
      %s94 = sphi 0, %s94
      %s96 = sphi 0, %s94
      %s97 = sphi 0, %s96
      %s111 = sphi 0, %s97
      %s115 = sphi 0, %s115
      %s117 = sphi 0, %s115
      %s118 = sphi 0, %s117
      %s132 = sphi 0, %s118
      %s138 = sphi 0, %s140
      %s141 = sphi 0, %s138
      %s142 = sphi 0, %s141
      %s158 = sphi 0, %s142
    $region4: #{tpu_custom_call.1} parent=1 // loop_header_branch
      %21 = sbr.rel (%p19) target = $region8
    $region5: #{tpu_custom_call.1} parent=1 // loop_body
      %s23 = ssub.s32 %s18, 1
      %s24 = ssub.s32 %s18, 2
      %s25 = sadd.s32 %s18, 1
      %s26 = ssub.s32 %s18, %s25
      %p27 = scmp.eq.s32.totalorder %s26, 0
      %s29 = sadd.s32 %s28, 1
      %s30 = scalar_select %p27, %s28, %s29
      %p33 = pneg %p27
      %p34 = scmp.eq.s32.totalorder %s18, 1
      %p35 = por %p33, %p34
      %p36 = scmp.ne.s32.totalorder %s28, %s31
      %p37 = scmp.eq.s32.totalorder %s18, 0
      %p38 = por %p36, %p37
      %p39 = scmp.ne.s32.totalorder %s28, %s31
      %p40 = scmp.eq.s32.totalorder %s23, 1
      %p41 = por %p39, %p40
      %p42 = scmp.ne.s32.totalorder %s31, %s32
      %p43 = scmp.eq.s32.totalorder %s23, 0
      %p44 = por %p42, %p43
      %p45 = scmp.ne.s32.totalorder %s31, %s32
      %p46 = scmp.eq.s32.totalorder %s24, 1
      %p47 = por %p45, %p46
      %p49 = scmp.ne.s32.totalorder %s32, %s48
      %p50 = scmp.eq.s32.totalorder %s24, 0
      %p51 = por %p49, %p50
      %s53 = sadd.s32 %s52, 1
      %p56 = scmp.eq.s32.totalorder %s18, 1
      %p57 = scmp.ne.s32.totalorder %s52, %s54
      %p58 = scmp.eq.s32.totalorder %s18, 0
      %p59 = por %p57, %p58
      %p60 = scmp.ne.s32.totalorder %s52, %s54
      %p61 = scmp.eq.s32.totalorder %s23, 1
      %p62 = por %p60, %p61
      %p63 = scmp.ne.s32.totalorder %s54, %s55
      %p64 = scmp.eq.s32.totalorder %s23, 0
      %p65 = por %p63, %p64
      %p66 = scmp.ne.s32.totalorder %s54, %s55
      %p67 = scmp.eq.s32.totalorder %s24, 1
      %p68 = por %p66, %p67
      %p70 = scmp.ne.s32.totalorder %s55, %s69
      %p71 = scmp.eq.s32.totalorder %s24, 0
      %p72 = por %p70, %p71
      %s74 = sadd.s32 %s73, 1
      %p77 = scmp.eq.s32.totalorder %s18, 1
      %p78 = scmp.ne.s32.totalorder %s73, %s75
      %p79 = scmp.eq.s32.totalorder %s18, 0
      %p80 = por %p78, %p79
      %p81 = scmp.ne.s32.totalorder %s73, %s75
      %p82 = scmp.eq.s32.totalorder %s23, 1
      %p83 = por %p81, %p82
      %p84 = scmp.ne.s32.totalorder %s75, %s76
      %p85 = scmp.eq.s32.totalorder %s23, 0
      %p86 = por %p84, %p85
      %p87 = scmp.ne.s32.totalorder %s75, %s76
      %p88 = scmp.eq.s32.totalorder %s24, 1
      %p89 = por %p87, %p88
      %p91 = scmp.ne.s32.totalorder %s76, %s90
      %p92 = scmp.eq.s32.totalorder %s24, 0
      %p93 = por %p91, %p92
      %s95 = sadd.s32 %s94, 1
      %p98 = scmp.eq.s32.totalorder %s18, 1
      %p99 = scmp.ne.s32.totalorder %s94, %s96
      %p100 = scmp.eq.s32.totalorder %s18, 0
      %p101 = por %p99, %p100
      %p102 = scmp.ne.s32.totalorder %s94, %s96
      %p103 = scmp.eq.s32.totalorder %s23, 1
      %p104 = por %p102, %p103
      %p105 = scmp.ne.s32.totalorder %s96, %s97
      %p106 = scmp.eq.s32.totalorder %s23, 0
      %p107 = por %p105, %p106
      %p108 = scmp.ne.s32.totalorder %s96, %s97
      %p109 = scmp.eq.s32.totalorder %s24, 1
      %p110 = por %p108, %p109
      %p112 = scmp.ne.s32.totalorder %s97, %s111
      %p113 = scmp.eq.s32.totalorder %s24, 0
      %p114 = por %p112, %p113
      %s116 = sadd.s32 %s115, 1
      %p119 = scmp.eq.s32.totalorder %s18, 1
      %p120 = scmp.ne.s32.totalorder %s115, %s117
      %p121 = scmp.eq.s32.totalorder %s18, 0
      %p122 = por %p120, %p121
      %p123 = scmp.ne.s32.totalorder %s115, %s117
      %p124 = scmp.eq.s32.totalorder %s23, 1
      %p125 = por %p123, %p124
      %p126 = scmp.ne.s32.totalorder %s117, %s118
      %p127 = scmp.eq.s32.totalorder %s23, 0
      %p128 = por %p126, %p127
      %p129 = scmp.ne.s32.totalorder %s117, %s118
      %p130 = scmp.eq.s32.totalorder %s24, 1
      %p131 = por %p129, %p130
      %p133 = scmp.ne.s32.totalorder %s118, %s132
      %p134 = scmp.eq.s32.totalorder %s24, 0
      %p135 = por %p133, %p134
      %s136 = ssub.s32 %s18, %s25
      %p137 = scmp.eq.s32.totalorder %s136, 0
      %s139 = sadd.s32 %s138, 1
      %s140 = scalar_select %p137, %s138, %s139
      %p143 = pneg %p137
      %p144 = scmp.eq.s32.totalorder %s18, 1
      %p145 = por %p143, %p144
      %p146 = scmp.ne.s32.totalorder %s138, %s141
      %p147 = scmp.eq.s32.totalorder %s18, 0
      %p148 = por %p146, %p147
      %p149 = scmp.ne.s32.totalorder %s138, %s141
      %p150 = scmp.eq.s32.totalorder %s23, 1
      %p151 = por %p149, %p150
      %p152 = scmp.ne.s32.totalorder %s141, %s142
      %p153 = scmp.eq.s32.totalorder %s23, 0
      %p154 = por %p152, %p153
      %p155 = scmp.ne.s32.totalorder %s141, %s142
      %p156 = scmp.eq.s32.totalorder %s24, 1
      %p157 = por %p155, %p156
      %p159 = scmp.ne.s32.totalorder %s142, %s158
      %p160 = scmp.eq.s32.totalorder %s24, 0
      %p161 = por %p159, %p160
      %p162 = scmp.le.s32.totalorder 1, %s18
      %p163 = scmp.lt.s32.totalorder %s18, 3
      %p164 = pnand %p162, %p163
      %p165 = pneg %p164
      // Predicated region
      $region9: #{tpu_custom_call.1} parent=5 // pred_check
        _
      $region10: #{tpu_custom_call.1} parent=5 // pred_check_branch
        %167 = sbr.rel (%p164) target = $region12
      $region11: #{tpu_custom_call.1} parent=5 // pred_region
        %s168 = ssub.s32 %s18, 1
        // Predicated region
        $region13: #{tpu_custom_call.1} parent=11 // pred_check
          %p169 = pneg %p65
        $region14: #{tpu_custom_call.1} parent=11 // pred_check_branch
          %171 = sbr.rel (%p169) target = $region16
        $region15: #{tpu_custom_call.1} parent=11 // pred_region
          _
        $region16: #{tpu_custom_call.1} parent=11 // pred_fallthru
          _
        // Predicated region
        $region17: #{tpu_custom_call.1} parent=11 // pred_check
          %p172 = pneg %p86
        $region18: #{tpu_custom_call.1} parent=11 // pred_check_branch
          %174 = sbr.rel (%p172) target = $region20
        $region19: #{tpu_custom_call.1} parent=11 // pred_region
          _
        $region20: #{tpu_custom_call.1} parent=11 // pred_fallthru
          _
        // Predicated region
        $region21: #{tpu_custom_call.1} parent=11 // pred_check
          %p175 = pneg %p107
        $region22: #{tpu_custom_call.1} parent=11 // pred_check_branch
          %177 = sbr.rel (%p175) target = $region24
        $region23: #{tpu_custom_call.1} parent=11 // pred_region
          %s179 = ssub.s32 4096, 4096
          %180 = vsyncadd [#allocation6], %s179
          %s181 = sshll.u32 [#allocation5], 4
          %s182 = int_to_ptr.vmem [resolvable:$true] %s181
          %187 = dma.hbm_to_vmem [thread:$0]  %s3, 4096, %s182, [#allocation6], 256, 256, 16
        $region24: #{tpu_custom_call.1} parent=11 // pred_fallthru
          _
        // Predicated region
        $region25: #{tpu_custom_call.1} parent=11 // pred_check
          %p188 = pneg %p128
        $region26: #{tpu_custom_call.1} parent=11 // pred_check_branch
          %190 = sbr.rel (%p188) target = $region28
        $region27: #{tpu_custom_call.1} parent=11 // pred_region
          %s192 = ssub.s32 2048, 2048
          %193 = vsyncadd [#allocation6], %s192
          %s194 = sshll.u32 [#allocation7], 4
          %s195 = int_to_ptr.vmem [resolvable:$true] %s194
          %200 = dma.hbm_to_vmem [thread:$0]  %s4, 2048, %s195, [#allocation6], 64, 64, 4
        $region28: #{tpu_custom_call.1} parent=11 // pred_fallthru
          _
      $region12: #{tpu_custom_call.1} parent=5 // pred_fallthru
        _
      %p201 = scmp.lt.s32.totalorder %s18, 2
      // Predicated region
      $region29: #{tpu_custom_call.1} parent=5 // pred_check
        %p202 = pneg %p201
      $region30: #{tpu_custom_call.1} parent=5 // pred_check_branch
        %204 = sbr.rel (%p202) target = $region32
      $region31: #{tpu_custom_call.1} parent=5 // pred_region
        // Predicated region
        $region33: #{tpu_custom_call.1} parent=31 // pred_check
          %p205 = pneg %p38
        $region34: #{tpu_custom_call.1} parent=31 // pred_check_branch
          %207 = sbr.rel (%p205) target = $region36
        $region35: #{tpu_custom_call.1} parent=31 // pred_region
          %s208 = sand.u32 %s28, 1
          %s209 = scalar_lea.sflag [#allocation3], %s208
          %s210 = sand.u32 %s28, 1
          %s211 = smul.addr %s210, 96
          %s212 = scalar_lea.vmem [#allocation2], %s211
          %s213 = smul.u32 12, %s18
          %s215 = ssub.s32 1536, 1536
          %216 = vsyncadd %s209, %s215
          %s217 = smul.addr %s213, 128
          %s218 = scalar_lea.hbm %s0, %s217
          %s219 = sshll.u32 %s212, 4
          %s220 = int_to_ptr.vmem [resolvable:$true] %s219
          %225 = dma.hbm_to_vmem [thread:$0]  %s218, 1536, %s220, %s209, 128, 128, 8
        $region36: #{tpu_custom_call.1} parent=31 // pred_fallthru
          _
      $region32: #{tpu_custom_call.1} parent=5 // pred_fallthru
        _
      %p226 = scmp.le.s32.totalorder 1, %s18
      %p227 = scmp.lt.s32.totalorder %s18, 3
      %p228 = pnand %p226, %p227
      %p229 = pneg %p228
      // Predicated region
      $region37: #{tpu_custom_call.1} parent=5 // pred_check
        _
      $region38: #{tpu_custom_call.1} parent=5 // pred_check_branch
        %231 = sbr.rel (%p228) target = $region40
      $region39: #{tpu_custom_call.1} parent=5 // pred_region
        %s232 = ssub.s32 %s18, 1
        %s233 = sand.u32 %s31, 1
        %s234 = scalar_lea.sflag [#allocation3], %s233
        %s235 = sand.u32 %s31, 1
        %s236 = smul.addr %s235, 96
        %s237 = scalar_lea.vmem [#allocation2], %s236
        // Predicated region
        $region41: #{tpu_custom_call.1} parent=39 // pred_check
          %p238 = pneg %p44
        $region42: #{tpu_custom_call.1} parent=39 // pred_check_branch
          %240 = sbr.rel (%p238) target = $region44
        $region43: #{tpu_custom_call.1} parent=39 // pred_region
          %241 = dma.done %s234, 1536
        $region44: #{tpu_custom_call.1} parent=39 // pred_fallthru
          _
        // Predicated region
        $region45: #{tpu_custom_call.1} parent=39 // pred_check
          %p242 = pneg %p107
        $region46: #{tpu_custom_call.1} parent=39 // pred_check_branch
          %244 = sbr.rel (%p242) target = $region48
        $region47: #{tpu_custom_call.1} parent=39 // pred_region
          %245 = dma.done [#allocation6], 4096
        $region48: #{tpu_custom_call.1} parent=39 // pred_fallthru
          _
        // Predicated region
        $region49: #{tpu_custom_call.1} parent=39 // pred_check
          %p246 = pneg %p128
        $region50: #{tpu_custom_call.1} parent=39 // pred_check_branch
          %248 = sbr.rel (%p246) target = $region52
        $region51: #{tpu_custom_call.1} parent=39 // pred_region
          %249 = dma.done [#allocation6], 2048
        $region52: #{tpu_custom_call.1} parent=39 // pred_fallthru
          _
        %s250 = sand.u32 %s31, 1
        %s251 = scalar_lea.sflag [#allocation3], %s250
        %s252 = sand.u32 %s31, 1
        %s253 = smul.addr %s252, 96
        %s254 = scalar_lea.vmem [#allocation2], %s253
        %p255 = pneg %p44
        %p256 = pneg %p41
        %p257 = pneg %p65
        %p258 = pneg %p62
        %p259 = pneg %p86
        %p260 = pneg %p83
        %p261 = pneg %p107
        %p262 = pneg %p104
        %p263 = pneg %p128
        %p264 = pneg %p125
        %p265 = pneg %p154
        %p266 = pneg %p151
        %s267 = sand.u32 %s141, 1
        %s268 = scalar_lea.sflag [#allocation4], %s267
        %s269 = sand.u32 %s141, 1
        %s270 = smul.addr %s269, 96
        %s271 = scalar_lea.vmem [#allocation8], %s270
        %s272 = smul.u32 12, %s23
        %s273 = smul.u32 12, %s23
        %v275 = vld [vmem:[%s237] sm:$0xff]
        %v276 = vld [vmem:[%s237 + $0x8] sm:$0xff]
        %v277 = vld [vmem:[%s237 + $0x10] sm:$0xff]
        %v278 = vld [vmem:[%s237 + $0x18] sm:$0xff]
        %v279 = vld [vmem:[%s237 + $0x20] sm:$0xff]
        %v280 = vld [vmem:[%s237 + $0x28] sm:$0xff]
        %v281 = vld [vmem:[%s237 + $0x30] sm:$0xff]
        %v282 = vld [vmem:[%s237 + $0x38] sm:$0xff]
        %v283 = vld [vmem:[%s237 + $0x40] sm:$0xff]
        %v284 = vld [vmem:[%s237 + $0x48] sm:$0xff]
        %v285 = vld [vmem:[%s237 + $0x50] sm:$0xff]
        %v286 = vld [vmem:[%s237 + $0x58] sm:$0xff]
        %287 = vadd.xlane.f32.xlu0 %v275
        %v288 = vpop.xlane.xlu0 %287
        %289 = vadd.xlane.f32.xlu0 %v276
        %v290 = vpop.xlane.xlu0 %289
        %291 = vadd.xlane.f32.xlu0 %v277
        %v292 = vpop.xlane.xlu0 %291
        %293 = vadd.xlane.f32.xlu0 %v278
        %v294 = vpop.xlane.xlu0 %293
        %295 = vadd.xlane.f32.xlu0 %v279
        %v296 = vpop.xlane.xlu0 %295
        %297 = vadd.xlane.f32.xlu0 %v280
        %v298 = vpop.xlane.xlu0 %297
        %299 = vadd.xlane.f32.xlu0 %v281
        %v300 = vpop.xlane.xlu0 %299
        %301 = vadd.xlane.f32.xlu0 %v282
        %v302 = vpop.xlane.xlu0 %301
        %303 = vadd.xlane.f32.xlu0 %v283
        %v304 = vpop.xlane.xlu0 %303
        %305 = vadd.xlane.f32.xlu0 %v284
        %v306 = vpop.xlane.xlu0 %305
        %307 = vadd.xlane.f32.xlu0 %v285
        %v308 = vpop.xlane.xlu0 %307
        %309 = vadd.xlane.f32.xlu0 %v286
        %v310 = vpop.xlane.xlu0 %309
        %v311 = vmul.f32 %v288, 0.015625
        %v312 = vmul.f32 %v290, 0.015625
        %v313 = vmul.f32 %v292, 0.015625
        %v314 = vmul.f32 %v294, 0.015625
        %v315 = vmul.f32 %v296, 0.015625
        %v316 = vmul.f32 %v298, 0.015625
        %v317 = vmul.f32 %v300, 0.015625
        %v318 = vmul.f32 %v302, 0.015625
        %v319 = vmul.f32 %v304, 0.015625
        %v320 = vmul.f32 %v306, 0.015625
        %v321 = vmul.f32 %v308, 0.015625
        %v322 = vmul.f32 %v310, 0.015625
        %v323 = vsub.f32 %v275, %v311
        %v324 = vsub.f32 %v276, %v312
        %v325 = vsub.f32 %v277, %v313
        %v326 = vsub.f32 %v278, %v314
        %v327 = vsub.f32 %v279, %v315
        %v328 = vsub.f32 %v280, %v316
        %v329 = vsub.f32 %v281, %v317
        %v330 = vsub.f32 %v282, %v318
        %v331 = vsub.f32 %v283, %v319
        %v332 = vsub.f32 %v284, %v320
        %v333 = vsub.f32 %v285, %v321
        %v334 = vsub.f32 %v286, %v322
        %v335 = vlaneseq
        %v336 = vand.u32 %v335, 127
        %vm337 = vcmp.lt.s32.totalorder %v336, 64
        %v338 = vsel %vm337, %v323, 0.0
        %v339 = vsel %vm337, %v324, 0.0
        %v340 = vsel %vm337, %v325, 0.0
        %v341 = vsel %vm337, %v326, 0.0
        %v342 = vsel %vm337, %v327, 0.0
        %v343 = vsel %vm337, %v328, 0.0
        %v344 = vsel %vm337, %v329, 0.0
        %v345 = vsel %vm337, %v330, 0.0
        %v346 = vsel %vm337, %v331, 0.0
        %v347 = vsel %vm337, %v332, 0.0
        %v348 = vsel %vm337, %v333, 0.0
        %v349 = vsel %vm337, %v334, 0.0
        %v350 = vmul.f32 %v338, %v338
        %v351 = vmul.f32 %v339, %v339
        %v352 = vmul.f32 %v340, %v340
        %v353 = vmul.f32 %v341, %v341
        %v354 = vmul.f32 %v342, %v342
        %v355 = vmul.f32 %v343, %v343
        %v356 = vmul.f32 %v344, %v344
        %v357 = vmul.f32 %v345, %v345
        %v358 = vmul.f32 %v346, %v346
        %v359 = vmul.f32 %v347, %v347
        %v360 = vmul.f32 %v348, %v348
        %v361 = vmul.f32 %v349, %v349
        %362 = vadd.xlane.f32.xlu0 %v350
        %v363 = vpop.xlane.xlu0 %362
        %364 = vadd.xlane.f32.xlu0 %v351
        %v365 = vpop.xlane.xlu0 %364
        %366 = vadd.xlane.f32.xlu0 %v352
        %v367 = vpop.xlane.xlu0 %366
        %368 = vadd.xlane.f32.xlu0 %v353
        %v369 = vpop.xlane.xlu0 %368
        %370 = vadd.xlane.f32.xlu0 %v354
        %v371 = vpop.xlane.xlu0 %370
        %372 = vadd.xlane.f32.xlu0 %v355
        %v373 = vpop.xlane.xlu0 %372
        %374 = vadd.xlane.f32.xlu0 %v356
        %v375 = vpop.xlane.xlu0 %374
        %376 = vadd.xlane.f32.xlu0 %v357
        %v377 = vpop.xlane.xlu0 %376
        %378 = vadd.xlane.f32.xlu0 %v358
        %v379 = vpop.xlane.xlu0 %378
        %380 = vadd.xlane.f32.xlu0 %v359
        %v381 = vpop.xlane.xlu0 %380
        %382 = vadd.xlane.f32.xlu0 %v360
        %v383 = vpop.xlane.xlu0 %382
        %384 = vadd.xlane.f32.xlu0 %v361
        %v385 = vpop.xlane.xlu0 %384
        %v386 = vmul.f32 %v363, 0.015625
        %v387 = vmul.f32 %v365, 0.015625
        %v388 = vmul.f32 %v367, 0.015625
        %v389 = vmul.f32 %v369, 0.015625
        %v390 = vmul.f32 %v371, 0.015625
        %v391 = vmul.f32 %v373, 0.015625
        %v392 = vmul.f32 %v375, 0.015625
        %v393 = vmul.f32 %v377, 0.015625
        %v394 = vmul.f32 %v379, 0.015625
        %v395 = vmul.f32 %v381, 0.015625
        %v396 = vmul.f32 %v383, 0.015625
        %v397 = vmul.f32 %v385, 0.015625
        %v398 = vadd.f32 %v386, 1e-05
        %v399 = vadd.f32 %v387, 1e-05
        %v400 = vadd.f32 %v388, 1e-05
        %v401 = vadd.f32 %v389, 1e-05
        %v402 = vadd.f32 %v390, 1e-05
        %v403 = vadd.f32 %v391, 1e-05
        %v404 = vadd.f32 %v392, 1e-05
        %v405 = vadd.f32 %v393, 1e-05
        %v406 = vadd.f32 %v394, 1e-05
        %v407 = vadd.f32 %v395, 1e-05
        %v408 = vadd.f32 %v396, 1e-05
        %v409 = vadd.f32 %v397, 1e-05
        %v410 = vrsqrt.pop %v398
        %v411 = vrsqrt.pop %v399
        %v412 = vrsqrt.pop %v400
        %v413 = vrsqrt.pop %v401
        %v414 = vrsqrt.pop %v402
        %v415 = vrsqrt.pop %v403
        %v416 = vrsqrt.pop %v404
        %v417 = vrsqrt.pop %v405
        %v418 = vrsqrt.pop %v406
        %v419 = vrsqrt.pop %v407
        %v420 = vrsqrt.pop %v408
        %v421 = vrsqrt.pop %v409
        %v422 = vmul.f32 %v338, %v410
        %v423 = vmul.f32 %v339, %v411
        %v424 = vmul.f32 %v340, %v412
        %v425 = vmul.f32 %v341, %v413
        %v426 = vmul.f32 %v342, %v414
        %v427 = vmul.f32 %v343, %v415
        %v428 = vmul.f32 %v344, %v416
        %v429 = vmul.f32 %v345, %v417
        %v430 = vmul.f32 %v346, %v418
        %v431 = vmul.f32 %v347, %v419
        %v432 = vmul.f32 %v348, %v420
        %v433 = vmul.f32 %v349, %v421
        %v434 = vld [vmem:[%s1] sm:$0x1]
        %v436 = vlaneseq
        %v437 = vshrl.u32 %v436, 7
        %v438 = vsub.s32 0, %v437
        %v439 = vrot.slane %v434, %v438
        %v441 = vmul.f32 %v422, %v439
        %v442 = vmul.f32 %v423, %v439
        %v443 = vmul.f32 %v424, %v439
        %v444 = vmul.f32 %v425, %v439
        %v445 = vmul.f32 %v426, %v439
        %v446 = vmul.f32 %v427, %v439
        %v447 = vmul.f32 %v428, %v439
        %v448 = vmul.f32 %v429, %v439
        %v449 = vmul.f32 %v430, %v439
        %v450 = vmul.f32 %v431, %v439
        %v451 = vmul.f32 %v432, %v439
        %v452 = vmul.f32 %v433, %v439
        %v453 = vld [vmem:[%s2] sm:$0x1]
        %v455 = vlaneseq
        %v456 = vshrl.u32 %v455, 7
        %v457 = vsub.s32 0, %v456
        %v458 = vrot.slane %v453, %v457
        %v460 = vadd.f32 %v441, %v458
        %v461 = vadd.f32 %v442, %v458
        %v462 = vadd.f32 %v443, %v458
        %v463 = vadd.f32 %v444, %v458
        %v464 = vadd.f32 %v445, %v458
        %v465 = vadd.f32 %v446, %v458
        %v466 = vadd.f32 %v447, %v458
        %v467 = vadd.f32 %v448, %v458
        %v468 = vadd.f32 %v449, %v458
        %v469 = vadd.f32 %v450, %v458
        %v470 = vadd.f32 %v451, %v458
        %v471 = vadd.f32 %v452, %v458
        %v472 = vpack.c.bf16 %v461, %v460
        %v473 = vpack.c.bf16 %v463, %v462
        %v474 = vpack.c.bf16 %v465, %v464
        %v475 = vpack.c.bf16 %v467, %v466
        %v476 = vpack.c.bf16 %v469, %v468
        %v477 = vpack.c.bf16 %v471, %v470
        %v478 = vld [vmem:[#allocation5] sm:$0xf]
        %v479 = vld [vmem:[#allocation5 + $0x10] sm:$0xf]
        %v480 = vld [vmem:[#allocation5 + $0x20] sm:$0xf]
        %v481 = vld [vmem:[#allocation5 + $0x30] sm:$0xf]
        %v482 = vld [vmem:[#allocation5 + $0x40] sm:$0xf]
        %v483 = vld [vmem:[#allocation5 + $0x50] sm:$0xf]
        %v484 = vld [vmem:[#allocation5 + $0x60] sm:$0xf]
        %v485 = vld [vmem:[#allocation5 + $0x70] sm:$0xf]
        %v486 = vld [vmem:[#allocation5 + $0x80] sm:$0xf]
        %v487 = vld [vmem:[#allocation5 + $0x90] sm:$0xf]
        %v488 = vld [vmem:[#allocation5 + $0xa0] sm:$0xf]
        %v489 = vld [vmem:[#allocation5 + $0xb0] sm:$0xf]
        %v490 = vld [vmem:[#allocation5 + $0xc0] sm:$0xf]
        %v491 = vld [vmem:[#allocation5 + $0xd0] sm:$0xf]
        %v492 = vld [vmem:[#allocation5 + $0xe0] sm:$0xf]
        %v493 = vld [vmem:[#allocation5 + $0xf0] sm:$0xf]
        %v510 = vunpack.c.l.b16 %v478
        %v511 = vunpack.c.l.b16 %v479
        %v512 = vunpack.c.l.b16 %v480
        %v513 = vunpack.c.l.b16 %v481
        %v514 = vunpack.c.l.b16 %v482
        %v515 = vunpack.c.l.b16 %v483
        %v516 = vunpack.c.l.b16 %v484
        %v517 = vunpack.c.l.b16 %v485
        %v518 = vunpack.c.l.b16 %v486
        %v519 = vunpack.c.l.b16 %v487
        %v520 = vunpack.c.l.b16 %v488
        %v521 = vunpack.c.l.b16 %v489
        %v522 = vunpack.c.l.b16 %v490
        %v523 = vunpack.c.l.b16 %v491
        %v524 = vunpack.c.l.b16 %v492
        %v525 = vunpack.c.l.b16 %v493
        %v526 = vpack.c.b16 %v511, %v510
        %v527 = vpack.c.b16 %v513, %v512
        %v528 = vpack.c.b16 %v515, %v514
        %v529 = vpack.c.b16 %v517, %v516
        %v530 = vpack.c.b16 %v519, %v518
        %v531 = vpack.c.b16 %v521, %v520
        %v532 = vpack.c.b16 %v523, %v522
        %v533 = vpack.c.b16 %v525, %v524
        %542 = vmatprep.subr.bf16.mxu0 0
        %543 = vmatpush1.bf16.msra.mxu0 %v533
        %544 = vmatprep.subr.bf16.mxu0 0
        %545 = vmatpush1.bf16.msra.mxu0 %v532
        %546 = vmatprep.subr.bf16.mxu0 0
        %547 = vmatpush1.bf16.msra.mxu0 %v531
        %548 = vmatprep.subr.bf16.mxu0 0
        %549 = vmatpush1.bf16.msra.mxu0 %v530
        %550 = vmatprep.subr.bf16.mxu0 0
        %551 = vmatpush1.bf16.msra.mxu0 %v529
        %552 = vmatprep.subr.bf16.mxu0 0
        %553 = vmatpush1.bf16.msra.mxu0 %v528
        %554 = vmatprep.subr.bf16.mxu0 0
        %555 = vmatpush1.bf16.msra.mxu0 %v527
        %556 = vmatprep.subr.bf16.mxu0 0
        %557 = vmatpush1.bf16.msra.mxu0 %v526
        %558 = vmatprep.subr.bf16.mxu0 0
        %559 = vmatpush2.bf16.msra.mxu0 0
        %560 = vmatprep.subr.bf16.mxu0 0
        %561 = vmatpush2.bf16.msra.mxu0 0
        %562 = vmatprep.subr.bf16.mxu0 0
        %563 = vmatpush2.bf16.msra.mxu0 0
        %564 = vmatprep.subr.bf16.mxu0 0
        %565 = vmatpush2.bf16.msra.mxu0 0
        %566 = vmatprep.subr.bf16.mxu0 0
        %567 = vmatpush2.bf16.msra.mxu0 0
        %568 = vmatprep.subr.bf16.mxu0 0
        %569 = vmatpush2.bf16.msra.mxu0 0
        %570 = vmatprep.subr.bf16.mxu0 0
        %571 = vmatpush2.bf16.msra.mxu0 0
        %572 = vmatprep.subr.bf16.mxu0 0
        %573 = vmatpush2.bf16.msra.mxu0 0
        %574 = vmatprep.mubr.bf16.mxu0 0
        %575 = vmatmul.mubr.bf16.gmra.mxu0 %v472
        %v576 = vpop.f32.mrf.mxu0
        %v577 = vadd.f32 0.0, %v576
        %v578 = vpop.f32.mrf.mxu0
        %v579 = vpop.f32.mrf.mxu0
        %v580 = vadd.f32 0.0, %v579
        %v581 = vpop.f32.mrf.mxu0
        %582 = vmatprep.mubr.bf16.mxu0 0
        %583 = vmatmul.mubr.bf16.gmra.mxu0 %v473
        %v584 = vpop.f32.mrf.mxu0
        %v585 = vadd.f32 0.0, %v584
        %v586 = vpop.f32.mrf.mxu0
        %v587 = vpop.f32.mrf.mxu0
        %v588 = vadd.f32 0.0, %v587
        %v589 = vpop.f32.mrf.mxu0
        %590 = vmatprep.mubr.bf16.mxu0 0
        %591 = vmatmul.mubr.bf16.gmra.mxu0 %v474
        %v592 = vpop.f32.mrf.mxu0
        %v593 = vadd.f32 0.0, %v592
        %v594 = vpop.f32.mrf.mxu0
        %v595 = vpop.f32.mrf.mxu0
        %v596 = vadd.f32 0.0, %v595
        %v597 = vpop.f32.mrf.mxu0
        %598 = vmatprep.mubr.bf16.mxu0 0
        %599 = vmatmul.mubr.bf16.gmra.mxu0 %v475
        %v600 = vpop.f32.mrf.mxu0
        %v601 = vadd.f32 0.0, %v600
        %v602 = vpop.f32.mrf.mxu0
        %v603 = vpop.f32.mrf.mxu0
        %v604 = vadd.f32 0.0, %v603
        %v605 = vpop.f32.mrf.mxu0
        %606 = vmatprep.mubr.bf16.mxu0 0
        %607 = vmatmul.mubr.bf16.gmra.mxu0 %v476
        %v608 = vpop.f32.mrf.mxu0
        %v609 = vadd.f32 0.0, %v608
        %v610 = vpop.f32.mrf.mxu0
        %v611 = vpop.f32.mrf.mxu0
        %v612 = vadd.f32 0.0, %v611
        %v613 = vpop.f32.mrf.mxu0
        %614 = vmatprep.mubr.bf16.mxu0 0
        %615 = vmatmul.mubr.bf16.gmra.mxu0 %v477
        %v616 = vpop.f32.mrf.mxu0
        %v617 = vadd.f32 0.0, %v616
        %v618 = vpop.f32.mrf.mxu0
        %v619 = vpop.f32.mrf.mxu0
        %v620 = vadd.f32 0.0, %v619
        %v621 = vpop.f32.mrf.mxu0
        %622 = vdwg.mxu0
        %v623 = vld [vmem:[#allocation5 + $0x8] sm:$0xf]
        %v624 = vld [vmem:[#allocation5 + $0x18] sm:$0xf]
        %v625 = vld [vmem:[#allocation5 + $0x28] sm:$0xf]
        %v626 = vld [vmem:[#allocation5 + $0x38] sm:$0xf]
        %v627 = vld [vmem:[#allocation5 + $0x48] sm:$0xf]
        %v628 = vld [vmem:[#allocation5 + $0x58] sm:$0xf]
        %v629 = vld [vmem:[#allocation5 + $0x68] sm:$0xf]
        %v630 = vld [vmem:[#allocation5 + $0x78] sm:$0xf]
        %v631 = vld [vmem:[#allocation5 + $0x88] sm:$0xf]
        %v632 = vld [vmem:[#allocation5 + $0x98] sm:$0xf]
        %v633 = vld [vmem:[#allocation5 + $0xa8] sm:$0xf]
        %v634 = vld [vmem:[#allocation5 + $0xb8] sm:$0xf]
        %v635 = vld [vmem:[#allocation5 + $0xc8] sm:$0xf]
        %v636 = vld [vmem:[#allocation5 + $0xd8] sm:$0xf]
        %v637 = vld [vmem:[#allocation5 + $0xe8] sm:$0xf]
        %v638 = vld [vmem:[#allocation5 + $0xf8] sm:$0xf]
        %v655 = vunpack.c.l.b16 %v623
        %v656 = vunpack.c.l.b16 %v624
        %v657 = vunpack.c.l.b16 %v625
        %v658 = vunpack.c.l.b16 %v626
        %v659 = vunpack.c.l.b16 %v627
        %v660 = vunpack.c.l.b16 %v628
        %v661 = vunpack.c.l.b16 %v629
        %v662 = vunpack.c.l.b16 %v630
        %v663 = vunpack.c.l.b16 %v631
        %v664 = vunpack.c.l.b16 %v632
        %v665 = vunpack.c.l.b16 %v633
        %v666 = vunpack.c.l.b16 %v634
        %v667 = vunpack.c.l.b16 %v635
        %v668 = vunpack.c.l.b16 %v636
        %v669 = vunpack.c.l.b16 %v637
        %v670 = vunpack.c.l.b16 %v638
        %v671 = vpack.c.b16 %v656, %v655
        %v672 = vpack.c.b16 %v658, %v657
        %v673 = vpack.c.b16 %v660, %v659
        %v674 = vpack.c.b16 %v662, %v661
        %v675 = vpack.c.b16 %v664, %v663
        %v676 = vpack.c.b16 %v666, %v665
        %v677 = vpack.c.b16 %v668, %v667
        %v678 = vpack.c.b16 %v670, %v669
        %687 = vmatprep.subr.bf16.mxu0 0
        %688 = vmatpush1.bf16.msra.mxu0 %v678
        %689 = vmatprep.subr.bf16.mxu0 0
        %690 = vmatpush1.bf16.msra.mxu0 %v677
        %691 = vmatprep.subr.bf16.mxu0 0
        %692 = vmatpush1.bf16.msra.mxu0 %v676
        %693 = vmatprep.subr.bf16.mxu0 0
        %694 = vmatpush1.bf16.msra.mxu0 %v675
        %695 = vmatprep.subr.bf16.mxu0 0
        %696 = vmatpush1.bf16.msra.mxu0 %v674
        %697 = vmatprep.subr.bf16.mxu0 0
        %698 = vmatpush1.bf16.msra.mxu0 %v673
        %699 = vmatprep.subr.bf16.mxu0 0
        %700 = vmatpush1.bf16.msra.mxu0 %v672
        %701 = vmatprep.subr.bf16.mxu0 0
        %702 = vmatpush1.bf16.msra.mxu0 %v671
        %703 = vmatprep.subr.bf16.mxu0 0
        %704 = vmatpush2.bf16.msra.mxu0 0
        %705 = vmatprep.subr.bf16.mxu0 0
        %706 = vmatpush2.bf16.msra.mxu0 0
        %707 = vmatprep.subr.bf16.mxu0 0
        %708 = vmatpush2.bf16.msra.mxu0 0
        %709 = vmatprep.subr.bf16.mxu0 0
        %710 = vmatpush2.bf16.msra.mxu0 0
        %711 = vmatprep.subr.bf16.mxu0 0
        %712 = vmatpush2.bf16.msra.mxu0 0
        %713 = vmatprep.subr.bf16.mxu0 0
        %714 = vmatpush2.bf16.msra.mxu0 0
        %715 = vmatprep.subr.bf16.mxu0 0
        %716 = vmatpush2.bf16.msra.mxu0 0
        %717 = vmatprep.subr.bf16.mxu0 0
        %718 = vmatpush2.bf16.msra.mxu0 0
        %719 = vmatprep.mubr.bf16.mxu0 0
        %720 = vmatmul.mubr.bf16.gmra.mxu0 %v472
        %v721 = vpop.f32.mrf.mxu0
        %v722 = vadd.f32 0.0, %v721
        %v723 = vpop.f32.mrf.mxu0
        %v724 = vpop.f32.mrf.mxu0
        %v725 = vadd.f32 0.0, %v724
        %v726 = vpop.f32.mrf.mxu0
        %727 = vmatprep.mubr.bf16.mxu0 0
        %728 = vmatmul.mubr.bf16.gmra.mxu0 %v473
        %v729 = vpop.f32.mrf.mxu0
        %v730 = vadd.f32 0.0, %v729
        %v731 = vpop.f32.mrf.mxu0
        %v732 = vpop.f32.mrf.mxu0
        %v733 = vadd.f32 0.0, %v732
        %v734 = vpop.f32.mrf.mxu0
        %735 = vmatprep.mubr.bf16.mxu0 0
        %736 = vmatmul.mubr.bf16.gmra.mxu0 %v474
        %v737 = vpop.f32.mrf.mxu0
        %v738 = vadd.f32 0.0, %v737
        %v739 = vpop.f32.mrf.mxu0
        %v740 = vpop.f32.mrf.mxu0
        %v741 = vadd.f32 0.0, %v740
        %v742 = vpop.f32.mrf.mxu0
        %743 = vmatprep.mubr.bf16.mxu0 0
        %744 = vmatmul.mubr.bf16.gmra.mxu0 %v475
        %v745 = vpop.f32.mrf.mxu0
        %v746 = vadd.f32 0.0, %v745
        %v747 = vpop.f32.mrf.mxu0
        %v748 = vpop.f32.mrf.mxu0
        %v749 = vadd.f32 0.0, %v748
        %v750 = vpop.f32.mrf.mxu0
        %751 = vmatprep.mubr.bf16.mxu0 0
        %752 = vmatmul.mubr.bf16.gmra.mxu0 %v476
        %v753 = vpop.f32.mrf.mxu0
        %v754 = vadd.f32 0.0, %v753
        %v755 = vpop.f32.mrf.mxu0
        %v756 = vpop.f32.mrf.mxu0
        %v757 = vadd.f32 0.0, %v756
        %v758 = vpop.f32.mrf.mxu0
        %759 = vmatprep.mubr.bf16.mxu0 0
        %760 = vmatmul.mubr.bf16.gmra.mxu0 %v477
        %v761 = vpop.f32.mrf.mxu0
        %v762 = vadd.f32 0.0, %v761
        %v763 = vpop.f32.mrf.mxu0
        %v764 = vpop.f32.mrf.mxu0
        %v765 = vadd.f32 0.0, %v764
        %v766 = vpop.f32.mrf.mxu0
        %767 = vdwg.mxu0
        %v768 = vxor.u32 %v577, 2147483648
        %v769 = vxor.u32 %v580, 2147483648
        %v770 = vxor.u32 %v585, 2147483648
        %v771 = vxor.u32 %v588, 2147483648
        %v772 = vxor.u32 %v593, 2147483648
        %v773 = vxor.u32 %v596, 2147483648
        %v774 = vxor.u32 %v601, 2147483648
        %v775 = vxor.u32 %v604, 2147483648
        %v776 = vxor.u32 %v609, 2147483648
        %v777 = vxor.u32 %v612, 2147483648
        %v778 = vxor.u32 %v617, 2147483648
        %v779 = vxor.u32 %v620, 2147483648
        %v780 = vmul.f32 %v768, 1.442695
        %v781 = vpow.pop %v780
        %v782 = vmul.f32 %v769, 1.442695
        %v783 = vpow.pop %v782
        %v784 = vmul.f32 %v770, 1.442695
        %v785 = vpow.pop %v784
        %v786 = vmul.f32 %v771, 1.442695
        %v787 = vpow.pop %v786
        %v788 = vmul.f32 %v772, 1.442695
        %v789 = vpow.pop %v788
        %v790 = vmul.f32 %v773, 1.442695
        %v791 = vpow.pop %v790
        %v792 = vmul.f32 %v774, 1.442695
        %v793 = vpow.pop %v792
        %v794 = vmul.f32 %v775, 1.442695
        %v795 = vpow.pop %v794
        %v796 = vmul.f32 %v776, 1.442695
        %v797 = vpow.pop %v796
        %v798 = vmul.f32 %v777, 1.442695
        %v799 = vpow.pop %v798
        %v800 = vmul.f32 %v778, 1.442695
        %v801 = vpow.pop %v800
        %v802 = vmul.f32 %v779, 1.442695
        %v803 = vpow.pop %v802
        %v804 = vadd.f32 %v781, 1.0
        %v805 = vadd.f32 %v783, 1.0
        %v806 = vadd.f32 %v785, 1.0
        %v807 = vadd.f32 %v787, 1.0
        %v808 = vadd.f32 %v789, 1.0
        %v809 = vadd.f32 %v791, 1.0
        %v810 = vadd.f32 %v793, 1.0
        %v811 = vadd.f32 %v795, 1.0
        %v812 = vadd.f32 %v797, 1.0
        %v813 = vadd.f32 %v799, 1.0
        %v814 = vadd.f32 %v801, 1.0
        %v815 = vadd.f32 %v803, 1.0
        %v816 = vrcp.pop %v804
        %v817 = vmul.f32 1.0, %v816
        %v818 = vrcp.pop %v805
        %v819 = vmul.f32 1.0, %v818
        %v820 = vrcp.pop %v806
        %v821 = vmul.f32 1.0, %v820
        %v822 = vrcp.pop %v807
        %v823 = vmul.f32 1.0, %v822
        %v824 = vrcp.pop %v808
        %v825 = vmul.f32 1.0, %v824
        %v826 = vrcp.pop %v809
        %v827 = vmul.f32 1.0, %v826
        %v828 = vrcp.pop %v810
        %v829 = vmul.f32 1.0, %v828
        %v830 = vrcp.pop %v811
        %v831 = vmul.f32 1.0, %v830
        %v832 = vrcp.pop %v812
        %v833 = vmul.f32 1.0, %v832
        %v834 = vrcp.pop %v813
        %v835 = vmul.f32 1.0, %v834
        %v836 = vrcp.pop %v814
        %v837 = vmul.f32 1.0, %v836
        %v838 = vrcp.pop %v815
        %v839 = vmul.f32 1.0, %v838
        %v840 = vmul.f32 %v577, %v817
        %v841 = vmul.f32 %v580, %v819
        %v842 = vmul.f32 %v585, %v821
        %v843 = vmul.f32 %v588, %v823
        %v844 = vmul.f32 %v593, %v825
        %v845 = vmul.f32 %v596, %v827
        %v846 = vmul.f32 %v601, %v829
        %v847 = vmul.f32 %v604, %v831
        %v848 = vmul.f32 %v609, %v833
        %v849 = vmul.f32 %v612, %v835
        %v850 = vmul.f32 %v617, %v837
        %v851 = vmul.f32 %v620, %v839
        %v852 = vmul.f32 %v840, %v722
        %v853 = vmul.f32 %v841, %v725
        %v854 = vmul.f32 %v842, %v730
        %v855 = vmul.f32 %v843, %v733
        %v856 = vmul.f32 %v844, %v738
        %v857 = vmul.f32 %v845, %v741
        %v858 = vmul.f32 %v846, %v746
        %v859 = vmul.f32 %v847, %v749
        %v860 = vmul.f32 %v848, %v754
        %v861 = vmul.f32 %v849, %v757
        %v862 = vmul.f32 %v850, %v762
        %v863 = vmul.f32 %v851, %v765
        %v864 = vpack.c.bf16 %v853, %v852
        %v865 = vpack.c.bf16 %v855, %v854
        %v866 = vpack.c.bf16 %v857, %v856
        %v867 = vpack.c.bf16 %v859, %v858
        %v868 = vpack.c.bf16 %v861, %v860
        %v869 = vpack.c.bf16 %v863, %v862
        %v870 = vld [vmem:[#allocation7] sm:$0xf]
        %v871 = vld [vmem:[#allocation7 + $0x4] sm:$0xf]
        %v872 = vld [vmem:[#allocation7 + $0x8] sm:$0xf]
        %v873 = vld [vmem:[#allocation7 + $0xc] sm:$0xf]
        %v874 = vld [vmem:[#allocation7 + $0x10] sm:$0xf]
        %v875 = vld [vmem:[#allocation7 + $0x14] sm:$0xf]
        %v876 = vld [vmem:[#allocation7 + $0x18] sm:$0xf]
        %v877 = vld [vmem:[#allocation7 + $0x1c] sm:$0xf]
        %v878 = vld [vmem:[#allocation7 + $0x20] sm:$0xf]
        %v879 = vld [vmem:[#allocation7 + $0x24] sm:$0xf]
        %v880 = vld [vmem:[#allocation7 + $0x28] sm:$0xf]
        %v881 = vld [vmem:[#allocation7 + $0x2c] sm:$0xf]
        %v882 = vld [vmem:[#allocation7 + $0x30] sm:$0xf]
        %v883 = vld [vmem:[#allocation7 + $0x34] sm:$0xf]
        %v884 = vld [vmem:[#allocation7 + $0x38] sm:$0xf]
        %v885 = vld [vmem:[#allocation7 + $0x3c] sm:$0xf]
        %v886 = vld [vmem:[#allocation5 + $0x4] sm:$0xf]
        %v887 = vld [vmem:[#allocation5 + $0x14] sm:$0xf]
        %v888 = vld [vmem:[#allocation5 + $0x24] sm:$0xf]
        %v889 = vld [vmem:[#allocation5 + $0x34] sm:$0xf]
        %v890 = vld [vmem:[#allocation5 + $0x44] sm:$0xf]
        %v891 = vld [vmem:[#allocation5 + $0x54] sm:$0xf]
        %v892 = vld [vmem:[#allocation5 + $0x64] sm:$0xf]
        %v893 = vld [vmem:[#allocation5 + $0x74] sm:$0xf]
        %v894 = vld [vmem:[#allocation5 + $0x84] sm:$0xf]
        %v895 = vld [vmem:[#allocation5 + $0x94] sm:$0xf]
        %v896 = vld [vmem:[#allocation5 + $0xa4] sm:$0xf]
        %v897 = vld [vmem:[#allocation5 + $0xb4] sm:$0xf]
        %v898 = vld [vmem:[#allocation5 + $0xc4] sm:$0xf]
        %v899 = vld [vmem:[#allocation5 + $0xd4] sm:$0xf]
        %v900 = vld [vmem:[#allocation5 + $0xe4] sm:$0xf]
        %v901 = vld [vmem:[#allocation5 + $0xf4] sm:$0xf]
        %v918 = vunpack.c.l.b16 %v886
        %v919 = vunpack.c.l.b16 %v887
        %v920 = vunpack.c.l.b16 %v888
        %v921 = vunpack.c.l.b16 %v889
        %v922 = vunpack.c.l.b16 %v890
        %v923 = vunpack.c.l.b16 %v891
        %v924 = vunpack.c.l.b16 %v892
        %v925 = vunpack.c.l.b16 %v893
        %v926 = vunpack.c.l.b16 %v894
        %v927 = vunpack.c.l.b16 %v895
        %v928 = vunpack.c.l.b16 %v896
        %v929 = vunpack.c.l.b16 %v897
        %v930 = vunpack.c.l.b16 %v898
        %v931 = vunpack.c.l.b16 %v899
        %v932 = vunpack.c.l.b16 %v900
        %v933 = vunpack.c.l.b16 %v901
        %v934 = vpack.c.b16 %v919, %v918
        %v935 = vpack.c.b16 %v921, %v920
        %v936 = vpack.c.b16 %v923, %v922
        %v937 = vpack.c.b16 %v925, %v924
        %v938 = vpack.c.b16 %v927, %v926
        %v939 = vpack.c.b16 %v929, %v928
        %v940 = vpack.c.b16 %v931, %v930
        %v941 = vpack.c.b16 %v933, %v932
        %950 = vmatprep.subr.bf16.mxu0 0
        %951 = vmatpush1.bf16.msra.mxu0 %v941
        %952 = vmatprep.subr.bf16.mxu0 0
        %953 = vmatpush1.bf16.msra.mxu0 %v940
        %954 = vmatprep.subr.bf16.mxu0 0
        %955 = vmatpush1.bf16.msra.mxu0 %v939
        %956 = vmatprep.subr.bf16.mxu0 0
        %957 = vmatpush1.bf16.msra.mxu0 %v938
        %958 = vmatprep.subr.bf16.mxu0 0
        %959 = vmatpush1.bf16.msra.mxu0 %v937
        %960 = vmatprep.subr.bf16.mxu0 0
        %961 = vmatpush1.bf16.msra.mxu0 %v936
        %962 = vmatprep.subr.bf16.mxu0 0
        %963 = vmatpush1.bf16.msra.mxu0 %v935
        %964 = vmatprep.subr.bf16.mxu0 0
        %965 = vmatpush1.bf16.msra.mxu0 %v934
        %966 = vmatprep.subr.bf16.mxu0 0
        %967 = vmatpush2.bf16.msra.mxu0 0
        %968 = vmatprep.subr.bf16.mxu0 0
        %969 = vmatpush2.bf16.msra.mxu0 0
        %970 = vmatprep.subr.bf16.mxu0 0
        %971 = vmatpush2.bf16.msra.mxu0 0
        %972 = vmatprep.subr.bf16.mxu0 0
        %973 = vmatpush2.bf16.msra.mxu0 0
        %974 = vmatprep.subr.bf16.mxu0 0
        %975 = vmatpush2.bf16.msra.mxu0 0
        %976 = vmatprep.subr.bf16.mxu0 0
        %977 = vmatpush2.bf16.msra.mxu0 0
        %978 = vmatprep.subr.bf16.mxu0 0
        %979 = vmatpush2.bf16.msra.mxu0 0
        %980 = vmatprep.subr.bf16.mxu0 0
        %981 = vmatpush2.bf16.msra.mxu0 0
        %982 = vmatprep.mubr.bf16.mxu0 0
        %983 = vmatmul.mubr.bf16.gmra.mxu0 %v472
        %v984 = vpop.f32.mrf.mxu0
        %v985 = vadd.f32 0.0, %v984
        %v986 = vpop.f32.mrf.mxu0
        %v987 = vpop.f32.mrf.mxu0
        %v988 = vadd.f32 0.0, %v987
        %v989 = vpop.f32.mrf.mxu0
        %990 = vmatprep.mubr.bf16.mxu0 0
        %991 = vmatmul.mubr.bf16.gmra.mxu0 %v473
        %v992 = vpop.f32.mrf.mxu0
        %v993 = vadd.f32 0.0, %v992
        %v994 = vpop.f32.mrf.mxu0
        %v995 = vpop.f32.mrf.mxu0
        %v996 = vadd.f32 0.0, %v995
        %v997 = vpop.f32.mrf.mxu0
        %998 = vmatprep.mubr.bf16.mxu0 0
        %999 = vmatmul.mubr.bf16.gmra.mxu0 %v474
        %v1000 = vpop.f32.mrf.mxu0
        %v1001 = vadd.f32 0.0, %v1000
        %v1002 = vpop.f32.mrf.mxu0
        %v1003 = vpop.f32.mrf.mxu0
        %v1004 = vadd.f32 0.0, %v1003
        %v1005 = vpop.f32.mrf.mxu0
        %1006 = vmatprep.mubr.bf16.mxu0 0
        %1007 = vmatmul.mubr.bf16.gmra.mxu0 %v475
        %v1008 = vpop.f32.mrf.mxu0
        %v1009 = vadd.f32 0.0, %v1008
        %v1010 = vpop.f32.mrf.mxu0
        %v1011 = vpop.f32.mrf.mxu0
        %v1012 = vadd.f32 0.0, %v1011
        %v1013 = vpop.f32.mrf.mxu0
        %1014 = vmatprep.mubr.bf16.mxu0 0
        %1015 = vmatmul.mubr.bf16.gmra.mxu0 %v476
        %v1016 = vpop.f32.mrf.mxu0
        %v1017 = vadd.f32 0.0, %v1016
        %v1018 = vpop.f32.mrf.mxu0
        %v1019 = vpop.f32.mrf.mxu0
        %v1020 = vadd.f32 0.0, %v1019
        %v1021 = vpop.f32.mrf.mxu0
        %1022 = vmatprep.mubr.bf16.mxu0 0
        %1023 = vmatmul.mubr.bf16.gmra.mxu0 %v477
        %v1024 = vpop.f32.mrf.mxu0
        %v1025 = vadd.f32 0.0, %v1024
        %v1026 = vpop.f32.mrf.mxu0
        %v1027 = vpop.f32.mrf.mxu0
        %v1028 = vadd.f32 0.0, %v1027
        %v1029 = vpop.f32.mrf.mxu0
        %1030 = vdwg.mxu0
        %v1031 = vld [vmem:[#allocation5 + $0xc] sm:$0xf]
        %v1032 = vld [vmem:[#allocation5 + $0x1c] sm:$0xf]
        %v1033 = vld [vmem:[#allocation5 + $0x2c] sm:$0xf]
        %v1034 = vld [vmem:[#allocation5 + $0x3c] sm:$0xf]
        %v1035 = vld [vmem:[#allocation5 + $0x4c] sm:$0xf]
        %v1036 = vld [vmem:[#allocation5 + $0x5c] sm:$0xf]
        %v1037 = vld [vmem:[#allocation5 + $0x6c] sm:$0xf]
        %v1038 = vld [vmem:[#allocation5 + $0x7c] sm:$0xf]
        %v1039 = vld [vmem:[#allocation5 + $0x8c] sm:$0xf]
        %v1040 = vld [vmem:[#allocation5 + $0x9c] sm:$0xf]
        %v1041 = vld [vmem:[#allocation5 + $0xac] sm:$0xf]
        %v1042 = vld [vmem:[#allocation5 + $0xbc] sm:$0xf]
        %v1043 = vld [vmem:[#allocation5 + $0xcc] sm:$0xf]
        %v1044 = vld [vmem:[#allocation5 + $0xdc] sm:$0xf]
        %v1045 = vld [vmem:[#allocation5 + $0xec] sm:$0xf]
        %v1046 = vld [vmem:[#allocation5 + $0xfc] sm:$0xf]
        %v1063 = vunpack.c.l.b16 %v1031
        %v1064 = vunpack.c.l.b16 %v1032
        %v1065 = vunpack.c.l.b16 %v1033
        %v1066 = vunpack.c.l.b16 %v1034
        %v1067 = vunpack.c.l.b16 %v1035
        %v1068 = vunpack.c.l.b16 %v1036
        %v1069 = vunpack.c.l.b16 %v1037
        %v1070 = vunpack.c.l.b16 %v1038
        %v1071 = vunpack.c.l.b16 %v1039
        %v1072 = vunpack.c.l.b16 %v1040
        %v1073 = vunpack.c.l.b16 %v1041
        %v1074 = vunpack.c.l.b16 %v1042
        %v1075 = vunpack.c.l.b16 %v1043
        %v1076 = vunpack.c.l.b16 %v1044
        %v1077 = vunpack.c.l.b16 %v1045
        %v1078 = vunpack.c.l.b16 %v1046
        %v1079 = vpack.c.b16 %v1064, %v1063
        %v1080 = vpack.c.b16 %v1066, %v1065
        %v1081 = vpack.c.b16 %v1068, %v1067
        %v1082 = vpack.c.b16 %v1070, %v1069
        %v1083 = vpack.c.b16 %v1072, %v1071
        %v1084 = vpack.c.b16 %v1074, %v1073
        %v1085 = vpack.c.b16 %v1076, %v1075
        %v1086 = vpack.c.b16 %v1078, %v1077
        %1095 = vmatprep.subr.bf16.mxu0 0
        %1096 = vmatpush1.bf16.msra.mxu0 %v1086
        %1097 = vmatprep.subr.bf16.mxu0 0
        %1098 = vmatpush1.bf16.msra.mxu0 %v1085
        %1099 = vmatprep.subr.bf16.mxu0 0
        %1100 = vmatpush1.bf16.msra.mxu0 %v1084
        %1101 = vmatprep.subr.bf16.mxu0 0
        %1102 = vmatpush1.bf16.msra.mxu0 %v1083
        %1103 = vmatprep.subr.bf16.mxu0 0
        %1104 = vmatpush1.bf16.msra.mxu0 %v1082
        %1105 = vmatprep.subr.bf16.mxu0 0
        %1106 = vmatpush1.bf16.msra.mxu0 %v1081
        %1107 = vmatprep.subr.bf16.mxu0 0
        %1108 = vmatpush1.bf16.msra.mxu0 %v1080
        %1109 = vmatprep.subr.bf16.mxu0 0
        %1110 = vmatpush1.bf16.msra.mxu0 %v1079
        %1111 = vmatprep.subr.bf16.mxu0 0
        %1112 = vmatpush2.bf16.msra.mxu0 0
        %1113 = vmatprep.subr.bf16.mxu0 0
        %1114 = vmatpush2.bf16.msra.mxu0 0
        %1115 = vmatprep.subr.bf16.mxu0 0
        %1116 = vmatpush2.bf16.msra.mxu0 0
        %1117 = vmatprep.subr.bf16.mxu0 0
        %1118 = vmatpush2.bf16.msra.mxu0 0
        %1119 = vmatprep.subr.bf16.mxu0 0
        %1120 = vmatpush2.bf16.msra.mxu0 0
        %1121 = vmatprep.subr.bf16.mxu0 0
        %1122 = vmatpush2.bf16.msra.mxu0 0
        %1123 = vmatprep.subr.bf16.mxu0 0
        %1124 = vmatpush2.bf16.msra.mxu0 0
        %1125 = vmatprep.subr.bf16.mxu0 0
        %1126 = vmatpush2.bf16.msra.mxu0 0
        %1127 = vmatprep.mubr.bf16.mxu0 0
        %1128 = vmatmul.mubr.bf16.gmra.mxu0 %v472
        %v1129 = vpop.f32.mrf.mxu0
        %v1130 = vadd.f32 0.0, %v1129
        %v1131 = vpop.f32.mrf.mxu0
        %v1132 = vpop.f32.mrf.mxu0
        %v1133 = vadd.f32 0.0, %v1132
        %v1134 = vpop.f32.mrf.mxu0
        %1135 = vmatprep.mubr.bf16.mxu0 0
        %1136 = vmatmul.mubr.bf16.gmra.mxu0 %v473
        %v1137 = vpop.f32.mrf.mxu0
        %v1138 = vadd.f32 0.0, %v1137
        %v1139 = vpop.f32.mrf.mxu0
        %v1140 = vpop.f32.mrf.mxu0
        %v1141 = vadd.f32 0.0, %v1140
        %v1142 = vpop.f32.mrf.mxu0
        %1143 = vmatprep.mubr.bf16.mxu0 0
        %1144 = vmatmul.mubr.bf16.gmra.mxu0 %v474
        %v1145 = vpop.f32.mrf.mxu0
        %v1146 = vadd.f32 0.0, %v1145
        %v1147 = vpop.f32.mrf.mxu0
        %v1148 = vpop.f32.mrf.mxu0
        %v1149 = vadd.f32 0.0, %v1148
        %v1150 = vpop.f32.mrf.mxu0
        %1151 = vmatprep.mubr.bf16.mxu0 0
        %1152 = vmatmul.mubr.bf16.gmra.mxu0 %v475
        %v1153 = vpop.f32.mrf.mxu0
        %v1154 = vadd.f32 0.0, %v1153
        %v1155 = vpop.f32.mrf.mxu0
        %v1156 = vpop.f32.mrf.mxu0
        %v1157 = vadd.f32 0.0, %v1156
        %v1158 = vpop.f32.mrf.mxu0
        %1159 = vmatprep.mubr.bf16.mxu0 0
        %1160 = vmatmul.mubr.bf16.gmra.mxu0 %v476
        %v1161 = vpop.f32.mrf.mxu0
        %v1162 = vadd.f32 0.0, %v1161
        %v1163 = vpop.f32.mrf.mxu0
        %v1164 = vpop.f32.mrf.mxu0
        %v1165 = vadd.f32 0.0, %v1164
        %v1166 = vpop.f32.mrf.mxu0
        %1167 = vmatprep.mubr.bf16.mxu0 0
        %1168 = vmatmul.mubr.bf16.gmra.mxu0 %v477
        %v1169 = vpop.f32.mrf.mxu0
        %v1170 = vadd.f32 0.0, %v1169
        %v1171 = vpop.f32.mrf.mxu0
        %v1172 = vpop.f32.mrf.mxu0
        %v1173 = vadd.f32 0.0, %v1172
        %v1174 = vpop.f32.mrf.mxu0
        %1175 = vdwg.mxu0
        %v1176 = vxor.u32 %v985, 2147483648
        %v1177 = vxor.u32 %v988, 2147483648
        %v1178 = vxor.u32 %v993, 2147483648
        %v1179 = vxor.u32 %v996, 2147483648
        %v1180 = vxor.u32 %v1001, 2147483648
        %v1181 = vxor.u32 %v1004, 2147483648
        %v1182 = vxor.u32 %v1009, 2147483648
        %v1183 = vxor.u32 %v1012, 2147483648
        %v1184 = vxor.u32 %v1017, 2147483648
        %v1185 = vxor.u32 %v1020, 2147483648
        %v1186 = vxor.u32 %v1025, 2147483648
        %v1187 = vxor.u32 %v1028, 2147483648
        %v1188 = vmul.f32 %v1176, 1.442695
        %v1189 = vpow.pop %v1188
        %v1190 = vmul.f32 %v1177, 1.442695
        %v1191 = vpow.pop %v1190
        %v1192 = vmul.f32 %v1178, 1.442695
        %v1193 = vpow.pop %v1192
        %v1194 = vmul.f32 %v1179, 1.442695
        %v1195 = vpow.pop %v1194
        %v1196 = vmul.f32 %v1180, 1.442695
        %v1197 = vpow.pop %v1196
        %v1198 = vmul.f32 %v1181, 1.442695
        %v1199 = vpow.pop %v1198
        %v1200 = vmul.f32 %v1182, 1.442695
        %v1201 = vpow.pop %v1200
        %v1202 = vmul.f32 %v1183, 1.442695
        %v1203 = vpow.pop %v1202
        %v1204 = vmul.f32 %v1184, 1.442695
        %v1205 = vpow.pop %v1204
        %v1206 = vmul.f32 %v1185, 1.442695
        %v1207 = vpow.pop %v1206
        %v1208 = vmul.f32 %v1186, 1.442695
        %v1209 = vpow.pop %v1208
        %v1210 = vmul.f32 %v1187, 1.442695
        %v1211 = vpow.pop %v1210
        %v1212 = vadd.f32 %v1189, 1.0
        %v1213 = vadd.f32 %v1191, 1.0
        %v1214 = vadd.f32 %v1193, 1.0
        %v1215 = vadd.f32 %v1195, 1.0
        %v1216 = vadd.f32 %v1197, 1.0
        %v1217 = vadd.f32 %v1199, 1.0
        %v1218 = vadd.f32 %v1201, 1.0
        %v1219 = vadd.f32 %v1203, 1.0
        %v1220 = vadd.f32 %v1205, 1.0
        %v1221 = vadd.f32 %v1207, 1.0
        %v1222 = vadd.f32 %v1209, 1.0
        %v1223 = vadd.f32 %v1211, 1.0
        %v1224 = vrcp.pop %v1212
        %v1225 = vmul.f32 1.0, %v1224
        %v1226 = vrcp.pop %v1213
        %v1227 = vmul.f32 1.0, %v1226
        %v1228 = vrcp.pop %v1214
        %v1229 = vmul.f32 1.0, %v1228
        %v1230 = vrcp.pop %v1215
        %v1231 = vmul.f32 1.0, %v1230
        %v1232 = vrcp.pop %v1216
        %v1233 = vmul.f32 1.0, %v1232
        %v1234 = vrcp.pop %v1217
        %v1235 = vmul.f32 1.0, %v1234
        %v1236 = vrcp.pop %v1218
        %v1237 = vmul.f32 1.0, %v1236
        %v1238 = vrcp.pop %v1219
        %v1239 = vmul.f32 1.0, %v1238
        %v1240 = vrcp.pop %v1220
        %v1241 = vmul.f32 1.0, %v1240
        %v1242 = vrcp.pop %v1221
        %v1243 = vmul.f32 1.0, %v1242
        %v1244 = vrcp.pop %v1222
        %v1245 = vmul.f32 1.0, %v1244
        %v1246 = vrcp.pop %v1223
        %v1247 = vmul.f32 1.0, %v1246
        %v1248 = vmul.f32 %v985, %v1225
        %v1249 = vmul.f32 %v988, %v1227
        %v1250 = vmul.f32 %v993, %v1229
        %v1251 = vmul.f32 %v996, %v1231
        %v1252 = vmul.f32 %v1001, %v1233
        %v1253 = vmul.f32 %v1004, %v1235
        %v1254 = vmul.f32 %v1009, %v1237
        %v1255 = vmul.f32 %v1012, %v1239
        %v1256 = vmul.f32 %v1017, %v1241
        %v1257 = vmul.f32 %v1020, %v1243
        %v1258 = vmul.f32 %v1025, %v1245
        %v1259 = vmul.f32 %v1028, %v1247
        %v1260 = vmul.f32 %v1248, %v1130
        %v1261 = vmul.f32 %v1249, %v1133
        %v1262 = vmul.f32 %v1250, %v1138
        %v1263 = vmul.f32 %v1251, %v1141
        %v1264 = vmul.f32 %v1252, %v1146
        %v1265 = vmul.f32 %v1253, %v1149
        %v1266 = vmul.f32 %v1254, %v1154
        %v1267 = vmul.f32 %v1255, %v1157
        %v1268 = vmul.f32 %v1256, %v1162
        %v1269 = vmul.f32 %v1257, %v1165
        %v1270 = vmul.f32 %v1258, %v1170
        %v1271 = vmul.f32 %v1259, %v1173
        %v1272 = vpack.c.bf16 %v1261, %v1260
        %v1273 = vpack.c.bf16 %v1263, %v1262
        %v1274 = vpack.c.bf16 %v1265, %v1264
        %v1275 = vpack.c.bf16 %v1267, %v1266
        %v1276 = vpack.c.bf16 %v1269, %v1268
        %v1277 = vpack.c.bf16 %v1271, %v1270
        %v1278 = vld [vmem:[#allocation7 + $0x40] sm:$0xf]
        %v1279 = vld [vmem:[#allocation7 + $0x44] sm:$0xf]
        %v1280 = vld [vmem:[#allocation7 + $0x48] sm:$0xf]
        %v1281 = vld [vmem:[#allocation7 + $0x4c] sm:$0xf]
        %v1282 = vld [vmem:[#allocation7 + $0x50] sm:$0xf]
        %v1283 = vld [vmem:[#allocation7 + $0x54] sm:$0xf]
        %v1284 = vld [vmem:[#allocation7 + $0x58] sm:$0xf]
        %v1285 = vld [vmem:[#allocation7 + $0x5c] sm:$0xf]
        %v1286 = vld [vmem:[#allocation7 + $0x60] sm:$0xf]
        %v1287 = vld [vmem:[#allocation7 + $0x64] sm:$0xf]
        %v1288 = vld [vmem:[#allocation7 + $0x68] sm:$0xf]
        %v1289 = vld [vmem:[#allocation7 + $0x6c] sm:$0xf]
        %v1290 = vld [vmem:[#allocation7 + $0x70] sm:$0xf]
        %v1291 = vld [vmem:[#allocation7 + $0x74] sm:$0xf]
        %v1292 = vld [vmem:[#allocation7 + $0x78] sm:$0xf]
        %v1293 = vld [vmem:[#allocation7 + $0x7c] sm:$0xf]
        %v1310 = vunpack.c.l.b16 %v1278
        %v1311 = vunpack.c.l.b16 %v1279
        %v1312 = vunpack.c.l.b16 %v1280
        %v1313 = vunpack.c.l.b16 %v1281
        %v1314 = vunpack.c.l.b16 %v1282
        %v1315 = vunpack.c.l.b16 %v1283
        %v1316 = vunpack.c.l.b16 %v1284
        %v1317 = vunpack.c.l.b16 %v1285
        %v1318 = vunpack.c.l.b16 %v1286
        %v1319 = vunpack.c.l.b16 %v1287
        %v1320 = vunpack.c.l.b16 %v1288
        %v1321 = vunpack.c.l.b16 %v1289
        %v1322 = vunpack.c.l.b16 %v1290
        %v1323 = vunpack.c.l.b16 %v1291
        %v1324 = vunpack.c.l.b16 %v1292
        %v1325 = vunpack.c.l.b16 %v1293
        %v1326 = vpack.c.b16 %v1311, %v1310
        %v1327 = vpack.c.b16 %v1313, %v1312
        %v1328 = vpack.c.b16 %v1315, %v1314
        %v1329 = vpack.c.b16 %v1317, %v1316
        %v1330 = vpack.c.b16 %v1319, %v1318
        %v1331 = vpack.c.b16 %v1321, %v1320
        %v1332 = vpack.c.b16 %v1323, %v1322
        %v1333 = vpack.c.b16 %v1325, %v1324
        %1342 = vmatprep.subr.bf16.mxu0 0
        %1343 = vmatpush1.bf16.msra.mxu0 %v1333
        %1344 = vmatprep.subr.bf16.mxu0 0
        %1345 = vmatpush1.bf16.msra.mxu0 %v1332
        %1346 = vmatprep.subr.bf16.mxu0 0
        %1347 = vmatpush1.bf16.msra.mxu0 %v1331
        %1348 = vmatprep.subr.bf16.mxu0 0
        %1349 = vmatpush1.bf16.msra.mxu0 %v1330
        %1350 = vmatprep.subr.bf16.mxu0 0
        %1351 = vmatpush1.bf16.msra.mxu0 %v1329
        %1352 = vmatprep.subr.bf16.mxu0 0
        %1353 = vmatpush1.bf16.msra.mxu0 %v1328
        %1354 = vmatprep.subr.bf16.mxu0 0
        %1355 = vmatpush1.bf16.msra.mxu0 %v1327
        %1356 = vmatprep.subr.bf16.mxu0 0
        %1357 = vmatpush1.bf16.msra.mxu0 %v1326
        %1358 = vmatprep.subr.bf16.mxu0 0
        %1359 = vmatpush2.bf16.msra.mxu0 0
        %1360 = vmatprep.subr.bf16.mxu0 0
        %1361 = vmatpush2.bf16.msra.mxu0 0
        %1362 = vmatprep.subr.bf16.mxu0 0
        %1363 = vmatpush2.bf16.msra.mxu0 0
        %1364 = vmatprep.subr.bf16.mxu0 0
        %1365 = vmatpush2.bf16.msra.mxu0 0
        %1366 = vmatprep.subr.bf16.mxu0 0
        %1367 = vmatpush2.bf16.msra.mxu0 0
        %1368 = vmatprep.subr.bf16.mxu0 0
        %1369 = vmatpush2.bf16.msra.mxu0 0
        %1370 = vmatprep.subr.bf16.mxu0 0
        %1371 = vmatpush2.bf16.msra.mxu0 0
        %1372 = vmatprep.subr.bf16.mxu0 0
        %1373 = vmatpush2.bf16.msra.mxu0 0
        %1374 = vmatprep.mubr.bf16.mxu0 0
        %1375 = vmatmul.mubr.bf16.gmra.mxu0 %v1272
        %v1376 = vpop.f32.mrf.mxu0
        %v1377 = vadd.f32 0.0, %v1376
        %v1378 = vpop.f32.mrf.mxu0
        %v1379 = vpop.f32.mrf.mxu0
        %v1380 = vadd.f32 0.0, %v1379
        %v1381 = vpop.f32.mrf.mxu0
        %1382 = vmatprep.mubr.bf16.mxu0 0
        %1383 = vmatmul.mubr.bf16.gmra.mxu0 %v1273
        %v1384 = vpop.f32.mrf.mxu0
        %v1385 = vadd.f32 0.0, %v1384
        %v1386 = vpop.f32.mrf.mxu0
        %v1387 = vpop.f32.mrf.mxu0
        %v1388 = vadd.f32 0.0, %v1387
        %v1389 = vpop.f32.mrf.mxu0
        %1390 = vmatprep.mubr.bf16.mxu0 0
        %1391 = vmatmul.mubr.bf16.gmra.mxu0 %v1274
        %v1392 = vpop.f32.mrf.mxu0
        %v1393 = vadd.f32 0.0, %v1392
        %v1394 = vpop.f32.mrf.mxu0
        %v1395 = vpop.f32.mrf.mxu0
        %v1396 = vadd.f32 0.0, %v1395
        %v1397 = vpop.f32.mrf.mxu0
        %1398 = vmatprep.mubr.bf16.mxu0 0
        %1399 = vmatmul.mubr.bf16.gmra.mxu0 %v1275
        %v1400 = vpop.f32.mrf.mxu0
        %v1401 = vadd.f32 0.0, %v1400
        %v1402 = vpop.f32.mrf.mxu0
        %v1403 = vpop.f32.mrf.mxu0
        %v1404 = vadd.f32 0.0, %v1403
        %v1405 = vpop.f32.mrf.mxu0
        %1406 = vmatprep.mubr.bf16.mxu0 0
        %1407 = vmatmul.mubr.bf16.gmra.mxu0 %v1276
        %v1408 = vpop.f32.mrf.mxu0
        %v1409 = vadd.f32 0.0, %v1408
        %v1410 = vpop.f32.mrf.mxu0
        %v1411 = vpop.f32.mrf.mxu0
        %v1412 = vadd.f32 0.0, %v1411
        %v1413 = vpop.f32.mrf.mxu0
        %1414 = vmatprep.mubr.bf16.mxu0 0
        %1415 = vmatmul.mubr.bf16.gmra.mxu0 %v1277
        %v1416 = vpop.f32.mrf.mxu0
        %v1417 = vadd.f32 0.0, %v1416
        %v1418 = vpop.f32.mrf.mxu0
        %v1419 = vpop.f32.mrf.mxu0
        %v1420 = vadd.f32 0.0, %v1419
        %v1421 = vpop.f32.mrf.mxu0
        %1422 = vdwg.mxu0
        %v1439 = vunpack.c.l.b16 %v870
        %v1440 = vunpack.c.l.b16 %v871
        %v1441 = vunpack.c.l.b16 %v872
        %v1442 = vunpack.c.l.b16 %v873
        %v1443 = vunpack.c.l.b16 %v874
        %v1444 = vunpack.c.l.b16 %v875
        %v1445 = vunpack.c.l.b16 %v876
        %v1446 = vunpack.c.l.b16 %v877
        %v1447 = vunpack.c.l.b16 %v878
        %v1448 = vunpack.c.l.b16 %v879
        %v1449 = vunpack.c.l.b16 %v880
        %v1450 = vunpack.c.l.b16 %v881
        %v1451 = vunpack.c.l.b16 %v882
        %v1452 = vunpack.c.l.b16 %v883
        %v1453 = vunpack.c.l.b16 %v884
        %v1454 = vunpack.c.l.b16 %v885
        %v1455 = vpack.c.b16 %v1440, %v1439
        %v1456 = vpack.c.b16 %v1442, %v1441
        %v1457 = vpack.c.b16 %v1444, %v1443
        %v1458 = vpack.c.b16 %v1446, %v1445
        %v1459 = vpack.c.b16 %v1448, %v1447
        %v1460 = vpack.c.b16 %v1450, %v1449
        %v1461 = vpack.c.b16 %v1452, %v1451
        %v1462 = vpack.c.b16 %v1454, %v1453
        %1471 = vmatprep.subr.bf16.mxu0 0
        %1472 = vmatpush1.bf16.msra.mxu0 %v1462
        %1473 = vmatprep.subr.bf16.mxu0 0
        %1474 = vmatpush1.bf16.msra.mxu0 %v1461
        %1475 = vmatprep.subr.bf16.mxu0 0
        %1476 = vmatpush1.bf16.msra.mxu0 %v1460
        %1477 = vmatprep.subr.bf16.mxu0 0
        %1478 = vmatpush1.bf16.msra.mxu0 %v1459
        %1479 = vmatprep.subr.bf16.mxu0 0
        %1480 = vmatpush1.bf16.msra.mxu0 %v1458
        %1481 = vmatprep.subr.bf16.mxu0 0
        %1482 = vmatpush1.bf16.msra.mxu0 %v1457
        %1483 = vmatprep.subr.bf16.mxu0 0
        %1484 = vmatpush1.bf16.msra.mxu0 %v1456
        %1485 = vmatprep.subr.bf16.mxu0 0
        %1486 = vmatpush1.bf16.msra.mxu0 %v1455
        %1487 = vmatprep.subr.bf16.mxu0 0
        %1488 = vmatpush2.bf16.msra.mxu0 0
        %1489 = vmatprep.subr.bf16.mxu0 0
        %1490 = vmatpush2.bf16.msra.mxu0 0
        %1491 = vmatprep.subr.bf16.mxu0 0
        %1492 = vmatpush2.bf16.msra.mxu0 0
        %1493 = vmatprep.subr.bf16.mxu0 0
        %1494 = vmatpush2.bf16.msra.mxu0 0
        %1495 = vmatprep.subr.bf16.mxu0 0
        %1496 = vmatpush2.bf16.msra.mxu0 0
        %1497 = vmatprep.subr.bf16.mxu0 0
        %1498 = vmatpush2.bf16.msra.mxu0 0
        %1499 = vmatprep.subr.bf16.mxu0 0
        %1500 = vmatpush2.bf16.msra.mxu0 0
        %1501 = vmatprep.subr.bf16.mxu0 0
        %1502 = vmatpush2.bf16.msra.mxu0 0
        %1503 = vmatprep.mubr.bf16.mxu0 0
        %1504 = vmatmul.mubr.bf16.gmra.mxu0 %v864
        %v1505 = vpop.f32.mrf.mxu0
        %v1506 = vadd.f32 %v1377, %v1505
        %v1507 = vpop.f32.mrf.mxu0
        %v1508 = vpop.f32.mrf.mxu0
        %v1509 = vadd.f32 %v1380, %v1508
        %v1510 = vpop.f32.mrf.mxu0
        %1511 = vmatprep.mubr.bf16.mxu0 0
        %1512 = vmatmul.mubr.bf16.gmra.mxu0 %v865
        %v1513 = vpop.f32.mrf.mxu0
        %v1514 = vadd.f32 %v1385, %v1513
        %v1515 = vpop.f32.mrf.mxu0
        %v1516 = vpop.f32.mrf.mxu0
        %v1517 = vadd.f32 %v1388, %v1516
        %v1518 = vpop.f32.mrf.mxu0
        %1519 = vmatprep.mubr.bf16.mxu0 0
        %1520 = vmatmul.mubr.bf16.gmra.mxu0 %v866
        %v1521 = vpop.f32.mrf.mxu0
        %v1522 = vadd.f32 %v1393, %v1521
        %v1523 = vpop.f32.mrf.mxu0
        %v1524 = vpop.f32.mrf.mxu0
        %v1525 = vadd.f32 %v1396, %v1524
        %v1526 = vpop.f32.mrf.mxu0
        %1527 = vmatprep.mubr.bf16.mxu0 0
        %1528 = vmatmul.mubr.bf16.gmra.mxu0 %v867
        %v1529 = vpop.f32.mrf.mxu0
        %v1530 = vadd.f32 %v1401, %v1529
        %v1531 = vpop.f32.mrf.mxu0
        %v1532 = vpop.f32.mrf.mxu0
        %v1533 = vadd.f32 %v1404, %v1532
        %v1534 = vpop.f32.mrf.mxu0
        %1535 = vmatprep.mubr.bf16.mxu0 0
        %1536 = vmatmul.mubr.bf16.gmra.mxu0 %v868
        %v1537 = vpop.f32.mrf.mxu0
        %v1538 = vadd.f32 %v1409, %v1537
        %v1539 = vpop.f32.mrf.mxu0
        %v1540 = vpop.f32.mrf.mxu0
        %v1541 = vadd.f32 %v1412, %v1540
        %v1542 = vpop.f32.mrf.mxu0
        %1543 = vmatprep.mubr.bf16.mxu0 0
        %1544 = vmatmul.mubr.bf16.gmra.mxu0 %v869
        %v1545 = vpop.f32.mrf.mxu0
        %v1546 = vadd.f32 %v1417, %v1545
        %v1547 = vpop.f32.mrf.mxu0
        %v1548 = vpop.f32.mrf.mxu0
        %v1549 = vadd.f32 %v1420, %v1548
        %v1550 = vpop.f32.mrf.mxu0
        %1551 = vdwg.mxu0
        %1552 = vst [vmem:[%s271] sm:$0xff] %v1506
        %1553 = vst [vmem:[%s271 + $0x8] sm:$0xff] %v1509
        %1554 = vst [vmem:[%s271 + $0x10] sm:$0xff] %v1514
        %1555 = vst [vmem:[%s271 + $0x18] sm:$0xff] %v1517
        %1556 = vst [vmem:[%s271 + $0x20] sm:$0xff] %v1522
        %1557 = vst [vmem:[%s271 + $0x28] sm:$0xff] %v1525
        %1558 = vst [vmem:[%s271 + $0x30] sm:$0xff] %v1530
        %1559 = vst [vmem:[%s271 + $0x38] sm:$0xff] %v1533
        %1560 = vst [vmem:[%s271 + $0x40] sm:$0xff] %v1538
        %1561 = vst [vmem:[%s271 + $0x48] sm:$0xff] %v1541
        %1562 = vst [vmem:[%s271 + $0x50] sm:$0xff] %v1546
        %1563 = vst [vmem:[%s271 + $0x58] sm:$0xff] %v1549
        %s1564 = sand.u32 %s141, 1
        %s1565 = scalar_lea.sflag [#allocation4], %s1564
        %s1566 = sand.u32 %s141, 1
        %s1567 = smul.addr %s1566, 96
        %s1568 = scalar_lea.vmem [#allocation8], %s1567
        // Predicated region
        $region53: #{tpu_custom_call.1} parent=39 // pred_check
          %p1569 = pneg %p151
        $region54: #{tpu_custom_call.1} parent=39 // pred_check_branch
          %1571 = sbr.rel (%p1569) target = $region56
        $region55: #{tpu_custom_call.1} parent=39 // pred_region
          %s1572 = smul.u32 12, %s23
          %s1574 = ssub.s32 1536, 1536
          %1575 = vsyncadd %s1565, %s1574
          %s1576 = smul.addr %s1572, 128
          %s1577 = scalar_lea.hbm %s5, %s1576
          %s1578 = sshll.u32 %s1568, 4
          %s1579 = int_to_ptr.vmem [resolvable:$true] %s1578
          %1584 = dma.vmem_to_hbm [thread:$0]  %s1579, 1536, %s1577, %s1565, 128, 128, 8
        $region56: #{tpu_custom_call.1} parent=39 // pred_fallthru
          _
      $region40: #{tpu_custom_call.1} parent=5 // pred_fallthru
        _
      %p1585 = scmp.le.s32.totalorder 2, %s18
      // Predicated region
      $region57: #{tpu_custom_call.1} parent=5 // pred_check
        %p1586 = pneg %p1585
      $region58: #{tpu_custom_call.1} parent=5 // pred_check_branch
        %1588 = sbr.rel (%p1586) target = $region60
      $region59: #{tpu_custom_call.1} parent=5 // pred_region
        %s1589 = ssub.s32 %s18, 2
        // Predicated region
        $region61: #{tpu_custom_call.1} parent=59 // pred_check
          %p1590 = pneg %p157
        $region62: #{tpu_custom_call.1} parent=59 // pred_check_branch
          %1592 = sbr.rel (%p1590) target = $region64
        $region63: #{tpu_custom_call.1} parent=59 // pred_region
          %s1593 = sand.u32 %s142, 1
          %s1594 = scalar_lea.sflag [#allocation4], %s1593
          %s1595 = sand.u32 %s142, 1
          %s1596 = smul.addr %s1595, 96
          %s1597 = scalar_lea.vmem [#allocation8], %s1596
          %1598 = dma.done %s1594, 1536
        $region64: #{tpu_custom_call.1} parent=59 // pred_fallthru
          _
      $region60: #{tpu_custom_call.1} parent=5 // pred_fallthru
        _
    $region6: #{tpu_custom_call.1} parent=1 // loop_footer
      %s22 = sadd.s32 1, %s18
    $region7: #{tpu_custom_call.1} parent=1 // loop_footer_branch
      %17 = sbr.rel target = $region3
    $region8: #{tpu_custom_call.1} parent=1 // loop_exit
      _
    %1599 = vsyncpa [#allocation3], 1
    %s1600 = scalar_lea.sflag [#allocation3], 1
    %1601 = vsyncpa %s1600, 1
    %1602 = vsyncpa [#allocation6], 1
    %1603 = vsyncpa [#allocation4], 1
    %s1604 = scalar_lea.sflag [#allocation4], 1
    %1605 = vsyncpa %s1604, 1

</llo_original>
